<compile_context>
chip_gen: v5e
topology: v5e:2x2
jax: 0.10.0
libtpu: 0.0.40
codegen_flags: <defaults>
</compile_context>

<pallas_src>
import jax
import jax.numpy as jnp
from jax import lax
from jax.experimental import pallas as pl
from jax.experimental.pallas import tpu as pltpu

VOCABS = (120, 20, 20, 20, 20, 20, 20, 10, 10)   # per nn.Embedding in the ModuleList
NUM_FEATS = len(VOCABS)
VPAD = 128                                        # every vocab padded to 128 rows


def _round_up(x, m):
    return ((x + m - 1) // m) * m


def _node_embedding_kernel(idx_ref, w_ref, o_ref):
    # idx_ref: [TMg, C]          int32, C = g*9 feature columns (g tokens / row)
    # w_ref:   [C*128, g*D]      f32 stacked (block-diagonal when g>1) tables
    # o_ref:   [TMg, g*D]        f32 packed summed embeddings (lane-dense)
    idx = idx_ref[...]
    tmg = o_ref.shape[0]
    ncols = idx_ref.shape[1]
    iota = lax.broadcasted_iota(jnp.int32, (tmg, VPAD), 1)       # [TMg, 128]
    # One full 128-lane tile per feature column; concat along lanes is
    # layout-free, then a single fused MXU contraction over K = C*128.
    # (Out-of-range indices >=128 silently select zero rows, like padding.)
    slabs = [(iota == idx[:, c:c + 1]).astype(jnp.float32) for c in range(ncols)]
    onehot = jnp.concatenate(slabs, axis=1) if ncols > 1 else slabs[0]
    o_ref[...] = jnp.dot(onehot, w_ref[...], preferred_element_type=jnp.float32)


def node_embedding(x_idx, weights, *, tile_m=None):
    """x_idx: [B, N, 9] int32; weights: [9, VPAD, D] f32; returns [B, N, D] f32."""
    B, N, F = x_idx.shape
    assert F == NUM_FEATS
    D = weights.shape[-1]
    M = B * N

    # Lane-dense output packing factor: g tokens share one 128-lane output row.
    g = VPAD // D if (D < VPAD and VPAD % D == 0) else 1
    unit = 8 * g                          # minimal legal token tile (8 sublanes)

    # Large default tile (grid-step overhead amortization); round any request
    # up to the legal unit; keep >=2 grid steps when there is enough work so
    # both v7x TensorCores are used.
    req = 512 if tile_m is None else int(tile_m)
    req = _round_up(max(req, unit), unit)
    m_units = -(-M // unit)
    if m_units >= 2:
        cap = _round_up(-(-m_units // 2) * unit, unit)
        tile_m_eff = min(req, cap)
    else:
        tile_m_eff = unit

    Mp = _round_up(max(M, tile_m_eff), tile_m_eff)
    idx_flat = x_idx.reshape(M, F).astype(jnp.int32)
    if Mp > M:
        # padded tokens use index 0 everywhere -> zero rows (discarded below)
        idx_flat = jnp.concatenate(
            [idx_flat, jnp.zeros((Mp - M, F), jnp.int32)], axis=0)

    K1 = NUM_FEATS * VPAD                               # 1152
    w_flat = weights.reshape(K1, D).astype(jnp.float32)
    if g > 1:
        # Block-diagonal weights so g packed tokens land in disjoint lane bands.
        eye = jnp.eye(g, dtype=w_flat.dtype)
        w_in = jnp.einsum('pq,kd->pkqd', eye, w_flat).reshape(g * K1, g * D)
        idx_in = idx_flat.reshape(Mp // g, g * F)       # byte-identical reshape
    else:
        w_in = w_flat
        idx_in = idx_flat

    rows = Mp // g
    brows = tile_m_eff // g
    out_cols = g * D

    cost = pl.CostEstimate(
        flops=2 * rows * (g * K1) * out_cols,
        transcendentals=0,
        bytes_accessed=idx_in.size * 4 + w_in.size * 4 + rows * out_cols * 4)

    out = pl.pallas_call(
        _node_embedding_kernel,
        out_shape=jax.ShapeDtypeStruct((rows, out_cols), jnp.float32),
        grid_spec=pltpu.PrefetchScalarGridSpec(
            num_scalar_prefetch=0,
            grid=(rows // brows,),
            in_specs=[
                pl.BlockSpec((brows, g * F), lambda m: (m, 0)),    # index tile
                pl.BlockSpec((g * K1, out_cols), lambda m: (0, 0)),  # full tables
            ],
            out_specs=pl.BlockSpec((brows, out_cols), lambda m: (m, 0)),
        ),
        compiler_params=pltpu.CompilerParams(
            dimension_semantics=("parallel",)),
        cost_estimate=cost,
    )(idx_in, w_in)

    # [Mp/g, g*D] row-major is byte-identical to [Mp, D]; slice off padding.
    return out.reshape(Mp, D)[:M].reshape(B, N, D)


def init_weights(key, embedding_features):
    """nn.Embedding-shaped init: N(0,1), padding row 0 zeroed, stacked [9, 128, D]."""
    tables = []
    for i, vocab in enumerate(VOCABS):
        k = jax.random.fold_in(key, i)
        w = jax.random.normal(k, (vocab, embedding_features), jnp.float32)
        w = w.at[0].set(0.0)                         # padding_idx=0 -> zero vector
        w = jnp.pad(w, ((0, VPAD - vocab), (0, 0)))  # pad vocab up to 128
        tables.append(w)
    return jnp.stack(tables, axis=0)                 # [9, VPAD, D]


def reference(x_idx, weights):
    """Pure-JAX reference of Node_Embedding.forward."""
    acc = 0
    for i in range(NUM_FEATS):
        acc = acc + jnp.take(weights[i], x_idx[:, :, i], axis=0)
    return acc


if __name__ == "__main__":
    key = jax.random.PRNGKey(0)
    B, N, D = 2, 8, 32

    weights = init_weights(jax.random.fold_in(key, 100), D)

    # Indices within each table's valid vocab range (including some 0 = padding).
    idx_cols = []
    for i, vocab in enumerate(VOCABS):
        k = jax.random.fold_in(key, 200 + i)
        idx_cols.append(jax.random.randint(k, (B, N, 1), 0, vocab, dtype=jnp.int32))
    x = jnp.concatenate(idx_cols, axis=-1)           # [B, N, 9] int32

    out = node_embedding(x, weights)
    out = jax.block_until_ready(out)

    ref = reference(x, weights)
    assert out.shape == (B, N, D)
    assert jnp.allclose(out, ref, atol=1e-5, rtol=1e-5)

    print("KERNEL_OK")
</pallas_src>

<mosaic_0001>
module attributes {stable_mosaic.version = 11 : i64} {
  func.func @_node_embedding_kernel(%arg0: i32, %arg1: memref<8x36xi32, #tpu.memory_space<vmem>>, %arg2: memref<4608x128xf32, #tpu.memory_space<vmem>>, %arg3: memref<8x128xf32, #tpu.memory_space<vmem>>) attributes {dimension_semantics = [#tpu.dimension_semantics<parallel>], iteration_bounds = array<i64: 1>, scalar_prefetch = 0 : i64, scratch_operands = 0 : i64, tpu.core_type = #tpu.core_type<tc>, window_params = [{transform_indices = @transform_0, window_bounds = array<i64: 8, 36>}, {pipeline_mode = #tpu.pipeline_mode<synchronous>, transform_indices = @transform_1, window_bounds = array<i64: 4608, 128>}, {transform_indices = @transform_2, window_bounds = array<i64: 8, 128>}]} {
    %c0 = arith.constant 0 : index
    %c0_0 = arith.constant 0 : index
    %0 = vector.load %arg1[%c0, %c0_0] : memref<8x36xi32, #tpu.memory_space<vmem>>, vector<8x36xi32>
    %1 = tpu.iota {dimensions = array<i32: 1>} : vector<8x128xi32>
    %2 = vector.extract_strided_slice %0 {offsets = [0, 0], sizes = [8, 1], strides = [1, 1]} : vector<8x36xi32> to vector<8x1xi32>
    %3 = vector.broadcast %2 : vector<8x1xi32> to vector<8x128xi32>
    %4 = arith.cmpi eq, %1, %3 : vector<8x128xi32>
    %5 = arith.extui %4 : vector<8x128xi1> to vector<8x128xi32>
    %6 = arith.sitofp %5 : vector<8x128xi32> to vector<8x128xf32>
    %7 = vector.extract_strided_slice %0 {offsets = [0, 1], sizes = [8, 1], strides = [1, 1]} : vector<8x36xi32> to vector<8x1xi32>
    %8 = vector.broadcast %7 : vector<8x1xi32> to vector<8x128xi32>
    %9 = arith.cmpi eq, %1, %8 : vector<8x128xi32>
    %10 = arith.extui %9 : vector<8x128xi1> to vector<8x128xi32>
    %11 = arith.sitofp %10 : vector<8x128xi32> to vector<8x128xf32>
    %12 = vector.extract_strided_slice %0 {offsets = [0, 2], sizes = [8, 1], strides = [1, 1]} : vector<8x36xi32> to vector<8x1xi32>
    %13 = vector.broadcast %12 : vector<8x1xi32> to vector<8x128xi32>
    %14 = arith.cmpi eq, %1, %13 : vector<8x128xi32>
    %15 = arith.extui %14 : vector<8x128xi1> to vector<8x128xi32>
    %16 = arith.sitofp %15 : vector<8x128xi32> to vector<8x128xf32>
    %17 = vector.extract_strided_slice %0 {offsets = [0, 3], sizes = [8, 1], strides = [1, 1]} : vector<8x36xi32> to vector<8x1xi32>
    %18 = vector.broadcast %17 : vector<8x1xi32> to vector<8x128xi32>
    %19 = arith.cmpi eq, %1, %18 : vector<8x128xi32>
    %20 = arith.extui %19 : vector<8x128xi1> to vector<8x128xi32>
    %21 = arith.sitofp %20 : vector<8x128xi32> to vector<8x128xf32>
    %22 = vector.extract_strided_slice %0 {offsets = [0, 4], sizes = [8, 1], strides = [1, 1]} : vector<8x36xi32> to vector<8x1xi32>
    %23 = vector.broadcast %22 : vector<8x1xi32> to vector<8x128xi32>
    %24 = arith.cmpi eq, %1, %23 : vector<8x128xi32>
    %25 = arith.extui %24 : vector<8x128xi1> to vector<8x128xi32>
    %26 = arith.sitofp %25 : vector<8x128xi32> to vector<8x128xf32>
    %27 = vector.extract_strided_slice %0 {offsets = [0, 5], sizes = [8, 1], strides = [1, 1]} : vector<8x36xi32> to vector<8x1xi32>
    %28 = vector.broadcast %27 : vector<8x1xi32> to vector<8x128xi32>
    %29 = arith.cmpi eq, %1, %28 : vector<8x128xi32>
    %30 = arith.extui %29 : vector<8x128xi1> to vector<8x128xi32>
    %31 = arith.sitofp %30 : vector<8x128xi32> to vector<8x128xf32>
    %32 = vector.extract_strided_slice %0 {offsets = [0, 6], sizes = [8, 1], strides = [1, 1]} : vector<8x36xi32> to vector<8x1xi32>
    %33 = vector.broadcast %32 : vector<8x1xi32> to vector<8x128xi32>
    %34 = arith.cmpi eq, %1, %33 : vector<8x128xi32>
    %35 = arith.extui %34 : vector<8x128xi1> to vector<8x128xi32>
    %36 = arith.sitofp %35 : vector<8x128xi32> to vector<8x128xf32>
    %37 = vector.extract_strided_slice %0 {offsets = [0, 7], sizes = [8, 1], strides = [1, 1]} : vector<8x36xi32> to vector<8x1xi32>
    %38 = vector.broadcast %37 : vector<8x1xi32> to vector<8x128xi32>
    %39 = arith.cmpi eq, %1, %38 : vector<8x128xi32>
    %40 = arith.extui %39 : vector<8x128xi1> to vector<8x128xi32>
    %41 = arith.sitofp %40 : vector<8x128xi32> to vector<8x128xf32>
    %42 = vector.extract_strided_slice %0 {offsets = [0, 8], sizes = [8, 1], strides = [1, 1]} : vector<8x36xi32> to vector<8x1xi32>
    %43 = vector.broadcast %42 : vector<8x1xi32> to vector<8x128xi32>
    %44 = arith.cmpi eq, %1, %43 : vector<8x128xi32>
    %45 = arith.extui %44 : vector<8x128xi1> to vector<8x128xi32>
    %46 = arith.sitofp %45 : vector<8x128xi32> to vector<8x128xf32>
    %47 = vector.extract_strided_slice %0 {offsets = [0, 9], sizes = [8, 1], strides = [1, 1]} : vector<8x36xi32> to vector<8x1xi32>
    %48 = vector.broadcast %47 : vector<8x1xi32> to vector<8x128xi32>
    %49 = arith.cmpi eq, %1, %48 : vector<8x128xi32>
    %50 = arith.extui %49 : vector<8x128xi1> to vector<8x128xi32>
    %51 = arith.sitofp %50 : vector<8x128xi32> to vector<8x128xf32>
    %52 = vector.extract_strided_slice %0 {offsets = [0, 10], sizes = [8, 1], strides = [1, 1]} : vector<8x36xi32> to vector<8x1xi32>
    %53 = vector.broadcast %52 : vector<8x1xi32> to vector<8x128xi32>
    %54 = arith.cmpi eq, %1, %53 : vector<8x128xi32>
    %55 = arith.extui %54 : vector<8x128xi1> to vector<8x128xi32>
    %56 = arith.sitofp %55 : vector<8x128xi32> to vector<8x128xf32>
    %57 = vector.extract_strided_slice %0 {offsets = [0, 11], sizes = [8, 1], strides = [1, 1]} : vector<8x36xi32> to vector<8x1xi32>
    %58 = vector.broadcast %57 : vector<8x1xi32> to vector<8x128xi32>
    %59 = arith.cmpi eq, %1, %58 : vector<8x128xi32>
    %60 = arith.extui %59 : vector<8x128xi1> to vector<8x128xi32>
    %61 = arith.sitofp %60 : vector<8x128xi32> to vector<8x128xf32>
    %62 = vector.extract_strided_slice %0 {offsets = [0, 12], sizes = [8, 1], strides = [1, 1]} : vector<8x36xi32> to vector<8x1xi32>
    %63 = vector.broadcast %62 : vector<8x1xi32> to vector<8x128xi32>
    %64 = arith.cmpi eq, %1, %63 : vector<8x128xi32>
    %65 = arith.extui %64 : vector<8x128xi1> to vector<8x128xi32>
    %66 = arith.sitofp %65 : vector<8x128xi32> to vector<8x128xf32>
    %67 = vector.extract_strided_slice %0 {offsets = [0, 13], sizes = [8, 1], strides = [1, 1]} : vector<8x36xi32> to vector<8x1xi32>
    %68 = vector.broadcast %67 : vector<8x1xi32> to vector<8x128xi32>
    %69 = arith.cmpi eq, %1, %68 : vector<8x128xi32>
    %70 = arith.extui %69 : vector<8x128xi1> to vector<8x128xi32>
    %71 = arith.sitofp %70 : vector<8x128xi32> to vector<8x128xf32>
    %72 = vector.extract_strided_slice %0 {offsets = [0, 14], sizes = [8, 1], strides = [1, 1]} : vector<8x36xi32> to vector<8x1xi32>
    %73 = vector.broadcast %72 : vector<8x1xi32> to vector<8x128xi32>
    %74 = arith.cmpi eq, %1, %73 : vector<8x128xi32>
    %75 = arith.extui %74 : vector<8x128xi1> to vector<8x128xi32>
    %76 = arith.sitofp %75 : vector<8x128xi32> to vector<8x128xf32>
    %77 = vector.extract_strided_slice %0 {offsets = [0, 15], sizes = [8, 1], strides = [1, 1]} : vector<8x36xi32> to vector<8x1xi32>
    %78 = vector.broadcast %77 : vector<8x1xi32> to vector<8x128xi32>
    %79 = arith.cmpi eq, %1, %78 : vector<8x128xi32>
    %80 = arith.extui %79 : vector<8x128xi1> to vector<8x128xi32>
    %81 = arith.sitofp %80 : vector<8x128xi32> to vector<8x128xf32>
    %82 = vector.extract_strided_slice %0 {offsets = [0, 16], sizes = [8, 1], strides = [1, 1]} : vector<8x36xi32> to vector<8x1xi32>
    %83 = vector.broadcast %82 : vector<8x1xi32> to vector<8x128xi32>
    %84 = arith.cmpi eq, %1, %83 : vector<8x128xi32>
    %85 = arith.extui %84 : vector<8x128xi1> to vector<8x128xi32>
    %86 = arith.sitofp %85 : vector<8x128xi32> to vector<8x128xf32>
    %87 = vector.extract_strided_slice %0 {offsets = [0, 17], sizes = [8, 1], strides = [1, 1]} : vector<8x36xi32> to vector<8x1xi32>
    %88 = vector.broadcast %87 : vector<8x1xi32> to vector<8x128xi32>
    %89 = arith.cmpi eq, %1, %88 : vector<8x128xi32>
    %90 = arith.extui %89 : vector<8x128xi1> to vector<8x128xi32>
    %91 = arith.sitofp %90 : vector<8x128xi32> to vector<8x128xf32>
    %92 = vector.extract_strided_slice %0 {offsets = [0, 18], sizes = [8, 1], strides = [1, 1]} : vector<8x36xi32> to vector<8x1xi32>
    %93 = vector.broadcast %92 : vector<8x1xi32> to vector<8x128xi32>
    %94 = arith.cmpi eq, %1, %93 : vector<8x128xi32>
    %95 = arith.extui %94 : vector<8x128xi1> to vector<8x128xi32>
    %96 = arith.sitofp %95 : vector<8x128xi32> to vector<8x128xf32>
    %97 = vector.extract_strided_slice %0 {offsets = [0, 19], sizes = [8, 1], strides = [1, 1]} : vector<8x36xi32> to vector<8x1xi32>
    %98 = vector.broadcast %97 : vector<8x1xi32> to vector<8x128xi32>
    %99 = arith.cmpi eq, %1, %98 : vector<8x128xi32>
    %100 = arith.extui %99 : vector<8x128xi1> to vector<8x128xi32>
    %101 = arith.sitofp %100 : vector<8x128xi32> to vector<8x128xf32>
    %102 = vector.extract_strided_slice %0 {offsets = [0, 20], sizes = [8, 1], strides = [1, 1]} : vector<8x36xi32> to vector<8x1xi32>
    %103 = vector.broadcast %102 : vector<8x1xi32> to vector<8x128xi32>
    %104 = arith.cmpi eq, %1, %103 : vector<8x128xi32>
    %105 = arith.extui %104 : vector<8x128xi1> to vector<8x128xi32>
    %106 = arith.sitofp %105 : vector<8x128xi32> to vector<8x128xf32>
    %107 = vector.extract_strided_slice %0 {offsets = [0, 21], sizes = [8, 1], strides = [1, 1]} : vector<8x36xi32> to vector<8x1xi32>
    %108 = vector.broadcast %107 : vector<8x1xi32> to vector<8x128xi32>
    %109 = arith.cmpi eq, %1, %108 : vector<8x128xi32>
    %110 = arith.extui %109 : vector<8x128xi1> to vector<8x128xi32>
    %111 = arith.sitofp %110 : vector<8x128xi32> to vector<8x128xf32>
    %112 = vector.extract_strided_slice %0 {offsets = [0, 22], sizes = [8, 1], strides = [1, 1]} : vector<8x36xi32> to vector<8x1xi32>
    %113 = vector.broadcast %112 : vector<8x1xi32> to vector<8x128xi32>
    %114 = arith.cmpi eq, %1, %113 : vector<8x128xi32>
    %115 = arith.extui %114 : vector<8x128xi1> to vector<8x128xi32>
    %116 = arith.sitofp %115 : vector<8x128xi32> to vector<8x128xf32>
    %117 = vector.extract_strided_slice %0 {offsets = [0, 23], sizes = [8, 1], strides = [1, 1]} : vector<8x36xi32> to vector<8x1xi32>
    %118 = vector.broadcast %117 : vector<8x1xi32> to vector<8x128xi32>
    %119 = arith.cmpi eq, %1, %118 : vector<8x128xi32>
    %120 = arith.extui %119 : vector<8x128xi1> to vector<8x128xi32>
    %121 = arith.sitofp %120 : vector<8x128xi32> to vector<8x128xf32>
    %122 = vector.extract_strided_slice %0 {offsets = [0, 24], sizes = [8, 1], strides = [1, 1]} : vector<8x36xi32> to vector<8x1xi32>
    %123 = vector.broadcast %122 : vector<8x1xi32> to vector<8x128xi32>
    %124 = arith.cmpi eq, %1, %123 : vector<8x128xi32>
    %125 = arith.extui %124 : vector<8x128xi1> to vector<8x128xi32>
    %126 = arith.sitofp %125 : vector<8x128xi32> to vector<8x128xf32>
    %127 = vector.extract_strided_slice %0 {offsets = [0, 25], sizes = [8, 1], strides = [1, 1]} : vector<8x36xi32> to vector<8x1xi32>
    %128 = vector.broadcast %127 : vector<8x1xi32> to vector<8x128xi32>
    %129 = arith.cmpi eq, %1, %128 : vector<8x128xi32>
    %130 = arith.extui %129 : vector<8x128xi1> to vector<8x128xi32>
    %131 = arith.sitofp %130 : vector<8x128xi32> to vector<8x128xf32>
    %132 = vector.extract_strided_slice %0 {offsets = [0, 26], sizes = [8, 1], strides = [1, 1]} : vector<8x36xi32> to vector<8x1xi32>
    %133 = vector.broadcast %132 : vector<8x1xi32> to vector<8x128xi32>
    %134 = arith.cmpi eq, %1, %133 : vector<8x128xi32>
    %135 = arith.extui %134 : vector<8x128xi1> to vector<8x128xi32>
    %136 = arith.sitofp %135 : vector<8x128xi32> to vector<8x128xf32>
    %137 = vector.extract_strided_slice %0 {offsets = [0, 27], sizes = [8, 1], strides = [1, 1]} : vector<8x36xi32> to vector<8x1xi32>
    %138 = vector.broadcast %137 : vector<8x1xi32> to vector<8x128xi32>
    %139 = arith.cmpi eq, %1, %138 : vector<8x128xi32>
    %140 = arith.extui %139 : vector<8x128xi1> to vector<8x128xi32>
    %141 = arith.sitofp %140 : vector<8x128xi32> to vector<8x128xf32>
    %142 = vector.extract_strided_slice %0 {offsets = [0, 28], sizes = [8, 1], strides = [1, 1]} : vector<8x36xi32> to vector<8x1xi32>
    %143 = vector.broadcast %142 : vector<8x1xi32> to vector<8x128xi32>
    %144 = arith.cmpi eq, %1, %143 : vector<8x128xi32>
    %145 = arith.extui %144 : vector<8x128xi1> to vector<8x128xi32>
    %146 = arith.sitofp %145 : vector<8x128xi32> to vector<8x128xf32>
    %147 = vector.extract_strided_slice %0 {offsets = [0, 29], sizes = [8, 1], strides = [1, 1]} : vector<8x36xi32> to vector<8x1xi32>
    %148 = vector.broadcast %147 : vector<8x1xi32> to vector<8x128xi32>
    %149 = arith.cmpi eq, %1, %148 : vector<8x128xi32>
    %150 = arith.extui %149 : vector<8x128xi1> to vector<8x128xi32>
    %151 = arith.sitofp %150 : vector<8x128xi32> to vector<8x128xf32>
    %152 = vector.extract_strided_slice %0 {offsets = [0, 30], sizes = [8, 1], strides = [1, 1]} : vector<8x36xi32> to vector<8x1xi32>
    %153 = vector.broadcast %152 : vector<8x1xi32> to vector<8x128xi32>
    %154 = arith.cmpi eq, %1, %153 : vector<8x128xi32>
    %155 = arith.extui %154 : vector<8x128xi1> to vector<8x128xi32>
    %156 = arith.sitofp %155 : vector<8x128xi32> to vector<8x128xf32>
    %157 = vector.extract_strided_slice %0 {offsets = [0, 31], sizes = [8, 1], strides = [1, 1]} : vector<8x36xi32> to vector<8x1xi32>
    %158 = vector.broadcast %157 : vector<8x1xi32> to vector<8x128xi32>
    %159 = arith.cmpi eq, %1, %158 : vector<8x128xi32>
    %160 = arith.extui %159 : vector<8x128xi1> to vector<8x128xi32>
    %161 = arith.sitofp %160 : vector<8x128xi32> to vector<8x128xf32>
    %162 = vector.extract_strided_slice %0 {offsets = [0, 32], sizes = [8, 1], strides = [1, 1]} : vector<8x36xi32> to vector<8x1xi32>
    %163 = vector.broadcast %162 : vector<8x1xi32> to vector<8x128xi32>
    %164 = arith.cmpi eq, %1, %163 : vector<8x128xi32>
    %165 = arith.extui %164 : vector<8x128xi1> to vector<8x128xi32>
    %166 = arith.sitofp %165 : vector<8x128xi32> to vector<8x128xf32>
    %167 = vector.extract_strided_slice %0 {offsets = [0, 33], sizes = [8, 1], strides = [1, 1]} : vector<8x36xi32> to vector<8x1xi32>
    %168 = vector.broadcast %167 : vector<8x1xi32> to vector<8x128xi32>
    %169 = arith.cmpi eq, %1, %168 : vector<8x128xi32>
    %170 = arith.extui %169 : vector<8x128xi1> to vector<8x128xi32>
    %171 = arith.sitofp %170 : vector<8x128xi32> to vector<8x128xf32>
    %172 = vector.extract_strided_slice %0 {offsets = [0, 34], sizes = [8, 1], strides = [1, 1]} : vector<8x36xi32> to vector<8x1xi32>
    %173 = vector.broadcast %172 : vector<8x1xi32> to vector<8x128xi32>
    %174 = arith.cmpi eq, %1, %173 : vector<8x128xi32>
    %175 = arith.extui %174 : vector<8x128xi1> to vector<8x128xi32>
    %176 = arith.sitofp %175 : vector<8x128xi32> to vector<8x128xf32>
    %177 = vector.extract_strided_slice %0 {offsets = [0, 35], sizes = [8, 1], strides = [1, 1]} : vector<8x36xi32> to vector<8x1xi32>
    %178 = vector.broadcast %177 : vector<8x1xi32> to vector<8x128xi32>
    %179 = arith.cmpi eq, %1, %178 : vector<8x128xi32>
    %180 = arith.extui %179 : vector<8x128xi1> to vector<8x128xi32>
    %181 = arith.sitofp %180 : vector<8x128xi32> to vector<8x128xf32>
    %182 = tpu.concatenate %6, %11, %16, %21, %26, %31, %36, %41, %46, %51, %56, %61, %66, %71, %76, %81 in 1 : vector<8x128xf32>, vector<8x128xf32>, vector<8x128xf32>, vector<8x128xf32>, vector<8x128xf32>, vector<8x128xf32>, vector<8x128xf32>, vector<8x128xf32>, vector<8x128xf32>, vector<8x128xf32>, vector<8x128xf32>, vector<8x128xf32>, vector<8x128xf32>, vector<8x128xf32>, vector<8x128xf32>, vector<8x128xf32> -> vector<8x2048xf32>
    %183 = tpu.concatenate %86, %91, %96, %101, %106, %111, %116, %121, %126, %131, %136, %141, %146, %151, %156, %161 in 1 : vector<8x128xf32>, vector<8x128xf32>, vector<8x128xf32>, vector<8x128xf32>, vector<8x128xf32>, vector<8x128xf32>, vector<8x128xf32>, vector<8x128xf32>, vector<8x128xf32>, vector<8x128xf32>, vector<8x128xf32>, vector<8x128xf32>, vector<8x128xf32>, vector<8x128xf32>, vector<8x128xf32>, vector<8x128xf32> -> vector<8x2048xf32>
    %184 = tpu.concatenate %166, %171, %176, %181 in 1 : vector<8x128xf32>, vector<8x128xf32>, vector<8x128xf32>, vector<8x128xf32> -> vector<8x512xf32>
    %185 = tpu.concatenate %182, %183, %184 in 1 : vector<8x2048xf32>, vector<8x2048xf32>, vector<8x512xf32> -> vector<8x4608xf32>
    %c0_1 = arith.constant 0 : index
    %c0_2 = arith.constant 0 : index
    %186 = vector.load %arg2[%c0_1, %c0_2] : memref<4608x128xf32, #tpu.memory_space<vmem>>, vector<4608x128xf32>
    %cst = arith.constant dense<0.000000e+00> : vector<8x128xf32>
    %187 = tpu.matmul %185, %186, %cst {dimension_numbers = #tpu.dot_dimension_numbers<[1], [0], [0], [1], [0, 0, 1, 1], [], []>} : vector<8x4608xf32>, vector<4608x128xf32>, vector<8x128xf32> -> vector<8x128xf32>
    %c0_3 = arith.constant 0 : index
    %c0_4 = arith.constant 0 : index
    %188 = vector.load %arg3[%c0_3, %c0_4] : memref<8x128xf32, #tpu.memory_space<vmem>>, vector<8x128xf32>
    tpu.vector_store %arg3[%c0_3, %c0_4], %187 {strides = array<i32>} : memref<8x128xf32, #tpu.memory_space<vmem>>, vector<8x128xf32>,
    return
  }
  func.func @transform_0(%arg0: i32) -> (i32, i32) {
    %c0_i32 = arith.constant 0 : i32
    %c0_i32_0 = arith.constant 0 : i32
    return %arg0, %c0_i32 : i32, i32
  }
  func.func @transform_1(%arg0: i32) -> (i32, i32) {
    %c0_i32 = arith.constant 0 : i32
    %c0_i32_0 = arith.constant 0 : i32
    %c0_i32_1 = arith.constant 0 : i32
    return %c0_i32, %c0_i32_0 : i32, i32
  }
  func.func @transform_2(%arg0: i32) -> (i32, i32) {
    %c0_i32 = arith.constant 0 : i32
    %c0_i32_0 = arith.constant 0 : i32
    return %arg0, %c0_i32 : i32, i32
  }
}

</mosaic_0001>

<llo_original>
// kernel: tpu_custom_call.1
$region0: #{tpu_custom_call.1}
  #allocation0 [shape = 'u32[]', space=smem, size = 0x4, offset = 0x4, fixed_abs, tag = 'smem constant byte address 0x4 - core index']
  #allocation1 [shape = 'u32[72,128]{1,0:T(1,128)}', space=vmem, size = 0x9000, scoped, tag = 'internal scratch']
  %s0 = inlined_call_operand.hbm [shape: s32[8,36], index: 0, kind: input, shape index: {}]
  %s1 = inlined_call_operand.hbm [shape: f32[4608,128], index: 1, kind: input, shape index: {}]
  %s2 = inlined_call_operand.hbm [shape: f32[8,128], index: 2, kind: output, shape index: {}]
  %s3 = sld [smem:[#allocation0]]
  $region26: #{tpu_custom_call.1} parent=0
    _
  %s5 = ssub.s32 1, %s3
  %s6 = scalar_select 0, %s5, %s3
  $region1: #{tpu_custom_call.1} parent=0
    #allocation2 [shape = 'u8[4096]{0}', space=vmem, size = 0x1000, scoped, tag = 'input window, operand 0, single buffered']
    #allocation3 [shape = 's32[1]{0}', space=sflag, size = 0x4, scoped, tag = 'scoped memory for tpu_custom_call.1']
    #allocation4 [shape = 's32[1]{0}', space=sflag, size = 0x4, scoped, tag = 'scoped memory for tpu_custom_call.1']
    #allocation5 [shape = 'u8[2359296]{0}', space=vmem, size = 0x240000, scoped, tag = 'input window, operand 1, single buffered']
    #allocation6 [shape = 's32[1]{0}', space=sflag, size = 0x4, scoped, tag = 'scoped memory for tpu_custom_call.1']
    #allocation7 [shape = 'u8[4096]{0}', space=vmem, size = 0x1000, scoped, tag = 'output window, operand 0, single buffered']
    %7 = vsyncpa [#allocation3], 0
    %8 = vsyncpa [#allocation6], 0
    %9 = vsyncpa [#allocation4], 0
    // Predicated region
    $region2: #{tpu_custom_call.1} parent=1 // pred_check
      _
    $region3: #{tpu_custom_call.1} parent=1 // pred_check_branch
      %11 = sbr.rel (0) target = $region5
    $region4: #{tpu_custom_call.1} parent=1 // pred_region
      %13 = vsyncadd [#allocation3], 0
      %s15 = sshll.u32 %s0, 4
      %s16 = int_to_ptr.hbm [resolvable:$true] %s15
      %s17 = sshll.u32 [#allocation2], 4
      %s18 = int_to_ptr.vmem [resolvable:$true] %s17
      %20 = dma.hbm_to_vmem [thread:$0]  %s16, 128, %s18, [#allocation3]
    $region5: #{tpu_custom_call.1} parent=1 // pred_fallthru
      _
    // Predicated region
    $region6: #{tpu_custom_call.1} parent=1 // pred_check
      _
    $region7: #{tpu_custom_call.1} parent=1 // pred_check_branch
      %22 = sbr.rel (0) target = $region9
    $region8: #{tpu_custom_call.1} parent=1 // pred_region
      %24 = vsyncadd [#allocation6], 0
      %s25 = sshll.u32 %s1, 4
      %s26 = int_to_ptr.hbm [resolvable:$true] %s25
      %s27 = sshll.u32 [#allocation5], 4
      %s28 = int_to_ptr.vmem [resolvable:$true] %s27
      %33 = dma.hbm_to_vmem [thread:$0]  %s26, 73728, %s28, [#allocation6], 128, 128, 8
    $region9: #{tpu_custom_call.1} parent=1 // pred_fallthru
      _
    // Predicated region
    $region10: #{tpu_custom_call.1} parent=1 // pred_check
      _
    $region11: #{tpu_custom_call.1} parent=1 // pred_check_branch
      %35 = sbr.rel (0) target = $region13
    $region12: #{tpu_custom_call.1} parent=1 // pred_region
      %37 = dma.done [#allocation3], 128
    $region13: #{tpu_custom_call.1} parent=1 // pred_fallthru
      _
    // Predicated region
    $region14: #{tpu_custom_call.1} parent=1 // pred_check
      _
    $region15: #{tpu_custom_call.1} parent=1 // pred_check_branch
      %39 = sbr.rel (0) target = $region17
    $region16: #{tpu_custom_call.1} parent=1 // pred_region
      %41 = dma.done [#allocation6], 73728
    $region17: #{tpu_custom_call.1} parent=1 // pred_fallthru
      _
    %v42 = vld [vmem:[#allocation2] sm:$0xff]
    %v43 = vlaneseq
    %v44 = vand.u32 %v43, 127
    %45 = vset.pattern.permute.xlu0 0
    %46 = vperm.xlu0 %45, %v42
    %v47 = vpop.permute.xlu0 %46
    %vm48 = vcmp.eq.s32.totalorder %v44, %v47
    %v49 = vsel %vm48, 1, 0
    %v50 = vcvt.s32.f32 %v49
    %51 = vset.pattern.permute.xlu0 1
    %52 = vperm.xlu0 %51, %v42
    %v53 = vpop.permute.xlu0 %52
    %vm54 = vcmp.eq.s32.totalorder %v44, %v53
    %v55 = vsel %vm54, 1, 0
    %v56 = vcvt.s32.f32 %v55
    %57 = vset.pattern.permute.xlu0 2
    %58 = vperm.xlu0 %57, %v42
    %v59 = vpop.permute.xlu0 %58
    %vm60 = vcmp.eq.s32.totalorder %v44, %v59
    %v61 = vsel %vm60, 1, 0
    %v62 = vcvt.s32.f32 %v61
    %63 = vset.pattern.permute.xlu0 3
    %64 = vperm.xlu0 %63, %v42
    %v65 = vpop.permute.xlu0 %64
    %vm66 = vcmp.eq.s32.totalorder %v44, %v65
    %v67 = vsel %vm66, 1, 0
    %v68 = vcvt.s32.f32 %v67
    %69 = vset.pattern.permute.xlu0 4
    %70 = vperm.xlu0 %69, %v42
    %v71 = vpop.permute.xlu0 %70
    %vm72 = vcmp.eq.s32.totalorder %v44, %v71
    %v73 = vsel %vm72, 1, 0
    %v74 = vcvt.s32.f32 %v73
    %75 = vset.pattern.permute.xlu0 5
    %76 = vperm.xlu0 %75, %v42
    %v77 = vpop.permute.xlu0 %76
    %vm78 = vcmp.eq.s32.totalorder %v44, %v77
    %v79 = vsel %vm78, 1, 0
    %v80 = vcvt.s32.f32 %v79
    %81 = vset.pattern.permute.xlu0 6
    %82 = vperm.xlu0 %81, %v42
    %v83 = vpop.permute.xlu0 %82
    %vm84 = vcmp.eq.s32.totalorder %v44, %v83
    %v85 = vsel %vm84, 1, 0
    %v86 = vcvt.s32.f32 %v85
    %87 = vset.pattern.permute.xlu0 7
    %88 = vperm.xlu0 %87, %v42
    %v89 = vpop.permute.xlu0 %88
    %vm90 = vcmp.eq.s32.totalorder %v44, %v89
    %v91 = vsel %vm90, 1, 0
    %v92 = vcvt.s32.f32 %v91
    %93 = vset.pattern.permute.xlu0 8
    %94 = vperm.xlu0 %93, %v42
    %v95 = vpop.permute.xlu0 %94
    %vm96 = vcmp.eq.s32.totalorder %v44, %v95
    %v97 = vsel %vm96, 1, 0
    %v98 = vcvt.s32.f32 %v97
    %99 = vset.pattern.permute.xlu0 9
    %100 = vperm.xlu0 %99, %v42
    %v101 = vpop.permute.xlu0 %100
    %vm102 = vcmp.eq.s32.totalorder %v44, %v101
    %v103 = vsel %vm102, 1, 0
    %v104 = vcvt.s32.f32 %v103
    %105 = vset.pattern.permute.xlu0 10
    %106 = vperm.xlu0 %105, %v42
    %v107 = vpop.permute.xlu0 %106
    %vm108 = vcmp.eq.s32.totalorder %v44, %v107
    %v109 = vsel %vm108, 1, 0
    %v110 = vcvt.s32.f32 %v109
    %111 = vset.pattern.permute.xlu0 11
    %112 = vperm.xlu0 %111, %v42
    %v113 = vpop.permute.xlu0 %112
    %vm114 = vcmp.eq.s32.totalorder %v44, %v113
    %v115 = vsel %vm114, 1, 0
    %v116 = vcvt.s32.f32 %v115
    %117 = vset.pattern.permute.xlu0 12
    %118 = vperm.xlu0 %117, %v42
    %v119 = vpop.permute.xlu0 %118
    %vm120 = vcmp.eq.s32.totalorder %v44, %v119
    %v121 = vsel %vm120, 1, 0
    %v122 = vcvt.s32.f32 %v121
    %123 = vset.pattern.permute.xlu0 13
    %124 = vperm.xlu0 %123, %v42
    %v125 = vpop.permute.xlu0 %124
    %vm126 = vcmp.eq.s32.totalorder %v44, %v125
    %v127 = vsel %vm126, 1, 0
    %v128 = vcvt.s32.f32 %v127
    %129 = vset.pattern.permute.xlu0 14
    %130 = vperm.xlu0 %129, %v42
    %v131 = vpop.permute.xlu0 %130
    %vm132 = vcmp.eq.s32.totalorder %v44, %v131
    %v133 = vsel %vm132, 1, 0
    %v134 = vcvt.s32.f32 %v133
    %135 = vset.pattern.permute.xlu0 15
    %136 = vperm.xlu0 %135, %v42
    %v137 = vpop.permute.xlu0 %136
    %vm138 = vcmp.eq.s32.totalorder %v44, %v137
    %v139 = vsel %vm138, 1, 0
    %v140 = vcvt.s32.f32 %v139
    %141 = vset.pattern.permute.xlu0 16
    %142 = vperm.xlu0 %141, %v42
    %v143 = vpop.permute.xlu0 %142
    %vm144 = vcmp.eq.s32.totalorder %v44, %v143
    %v145 = vsel %vm144, 1, 0
    %v146 = vcvt.s32.f32 %v145
    %147 = vset.pattern.permute.xlu0 17
    %148 = vperm.xlu0 %147, %v42
    %v149 = vpop.permute.xlu0 %148
    %vm150 = vcmp.eq.s32.totalorder %v44, %v149
    %v151 = vsel %vm150, 1, 0
    %v152 = vcvt.s32.f32 %v151
    %153 = vset.pattern.permute.xlu0 18
    %154 = vperm.xlu0 %153, %v42
    %v155 = vpop.permute.xlu0 %154
    %vm156 = vcmp.eq.s32.totalorder %v44, %v155
    %v157 = vsel %vm156, 1, 0
    %v158 = vcvt.s32.f32 %v157
    %159 = vset.pattern.permute.xlu0 19
    %160 = vperm.xlu0 %159, %v42
    %v161 = vpop.permute.xlu0 %160
    %vm162 = vcmp.eq.s32.totalorder %v44, %v161
    %v163 = vsel %vm162, 1, 0
    %v164 = vcvt.s32.f32 %v163
    %165 = vset.pattern.permute.xlu0 20
    %166 = vperm.xlu0 %165, %v42
    %v167 = vpop.permute.xlu0 %166
    %vm168 = vcmp.eq.s32.totalorder %v44, %v167
    %v169 = vsel %vm168, 1, 0
    %v170 = vcvt.s32.f32 %v169
    %171 = vset.pattern.permute.xlu0 21
    %172 = vperm.xlu0 %171, %v42
    %v173 = vpop.permute.xlu0 %172
    %vm174 = vcmp.eq.s32.totalorder %v44, %v173
    %v175 = vsel %vm174, 1, 0
    %v176 = vcvt.s32.f32 %v175
    %177 = vset.pattern.permute.xlu0 22
    %178 = vperm.xlu0 %177, %v42
    %v179 = vpop.permute.xlu0 %178
    %vm180 = vcmp.eq.s32.totalorder %v44, %v179
    %v181 = vsel %vm180, 1, 0
    %v182 = vcvt.s32.f32 %v181
    %183 = vset.pattern.permute.xlu0 23
    %184 = vperm.xlu0 %183, %v42
    %v185 = vpop.permute.xlu0 %184
    %vm186 = vcmp.eq.s32.totalorder %v44, %v185
    %v187 = vsel %vm186, 1, 0
    %v188 = vcvt.s32.f32 %v187
    %189 = vset.pattern.permute.xlu0 24
    %190 = vperm.xlu0 %189, %v42
    %v191 = vpop.permute.xlu0 %190
    %vm192 = vcmp.eq.s32.totalorder %v44, %v191
    %v193 = vsel %vm192, 1, 0
    %v194 = vcvt.s32.f32 %v193
    %195 = vset.pattern.permute.xlu0 25
    %196 = vperm.xlu0 %195, %v42
    %v197 = vpop.permute.xlu0 %196
    %vm198 = vcmp.eq.s32.totalorder %v44, %v197
    %v199 = vsel %vm198, 1, 0
    %v200 = vcvt.s32.f32 %v199
    %201 = vset.pattern.permute.xlu0 26
    %202 = vperm.xlu0 %201, %v42
    %v203 = vpop.permute.xlu0 %202
    %vm204 = vcmp.eq.s32.totalorder %v44, %v203
    %v205 = vsel %vm204, 1, 0
    %v206 = vcvt.s32.f32 %v205
    %207 = vset.pattern.permute.xlu0 27
    %208 = vperm.xlu0 %207, %v42
    %v209 = vpop.permute.xlu0 %208
    %vm210 = vcmp.eq.s32.totalorder %v44, %v209
    %v211 = vsel %vm210, 1, 0
    %v212 = vcvt.s32.f32 %v211
    %213 = vset.pattern.permute.xlu0 28
    %214 = vperm.xlu0 %213, %v42
    %v215 = vpop.permute.xlu0 %214
    %vm216 = vcmp.eq.s32.totalorder %v44, %v215
    %v217 = vsel %vm216, 1, 0
    %v218 = vcvt.s32.f32 %v217
    %219 = vset.pattern.permute.xlu0 29
    %220 = vperm.xlu0 %219, %v42
    %v221 = vpop.permute.xlu0 %220
    %vm222 = vcmp.eq.s32.totalorder %v44, %v221
    %v223 = vsel %vm222, 1, 0
    %v224 = vcvt.s32.f32 %v223
    %225 = vset.pattern.permute.xlu0 30
    %226 = vperm.xlu0 %225, %v42
    %v227 = vpop.permute.xlu0 %226
    %vm228 = vcmp.eq.s32.totalorder %v44, %v227
    %v229 = vsel %vm228, 1, 0
    %v230 = vcvt.s32.f32 %v229
    %231 = vset.pattern.permute.xlu0 31
    %232 = vperm.xlu0 %231, %v42
    %v233 = vpop.permute.xlu0 %232
    %vm234 = vcmp.eq.s32.totalorder %v44, %v233
    %v235 = vsel %vm234, 1, 0
    %v236 = vcvt.s32.f32 %v235
    %237 = vset.pattern.permute.xlu0 32
    %238 = vperm.xlu0 %237, %v42
    %v239 = vpop.permute.xlu0 %238
    %vm240 = vcmp.eq.s32.totalorder %v44, %v239
    %v241 = vsel %vm240, 1, 0
    %v242 = vcvt.s32.f32 %v241
    %243 = vset.pattern.permute.xlu0 33
    %244 = vperm.xlu0 %243, %v42
    %v245 = vpop.permute.xlu0 %244
    %vm246 = vcmp.eq.s32.totalorder %v44, %v245
    %v247 = vsel %vm246, 1, 0
    %v248 = vcvt.s32.f32 %v247
    %249 = vset.pattern.permute.xlu0 34
    %250 = vperm.xlu0 %249, %v42
    %v251 = vpop.permute.xlu0 %250
    %vm252 = vcmp.eq.s32.totalorder %v44, %v251
    %v253 = vsel %vm252, 1, 0
    %v254 = vcvt.s32.f32 %v253
    %255 = vset.pattern.permute.xlu0 35
    %256 = vperm.xlu0 %255, %v42
    %v257 = vpop.permute.xlu0 %256
    %vm258 = vcmp.eq.s32.totalorder %v44, %v257
    %v259 = vsel %vm258, 1, 0
    %v260 = vcvt.s32.f32 %v259
    %v261 = vld [vmem:[#allocation5] sm:$0xff]
    %v262 = vld [vmem:[#allocation5 + $0x8] sm:$0xff]
    %v263 = vld [vmem:[#allocation5 + $0x10] sm:$0xff]
    %v264 = vld [vmem:[#allocation5 + $0x18] sm:$0xff]
    %v265 = vld [vmem:[#allocation5 + $0x20] sm:$0xff]
    %v266 = vld [vmem:[#allocation5 + $0x28] sm:$0xff]
    %v267 = vld [vmem:[#allocation5 + $0x30] sm:$0xff]
    %v268 = vld [vmem:[#allocation5 + $0x38] sm:$0xff]
    %v269 = vld [vmem:[#allocation5 + $0x40] sm:$0xff]
    %v270 = vld [vmem:[#allocation5 + $0x48] sm:$0xff]
    %v271 = vld [vmem:[#allocation5 + $0x50] sm:$0xff]
    %v272 = vld [vmem:[#allocation5 + $0x58] sm:$0xff]
    %v273 = vld [vmem:[#allocation5 + $0x60] sm:$0xff]
    %v274 = vld [vmem:[#allocation5 + $0x68] sm:$0xff]
    %v275 = vld [vmem:[#allocation5 + $0x70] sm:$0xff]
    %v276 = vld [vmem:[#allocation5 + $0x78] sm:$0xff]
    %v277 = vld [vmem:[#allocation5 + $0x80] sm:$0xff]
    %v278 = vld [vmem:[#allocation5 + $0x88] sm:$0xff]
    %v279 = vld [vmem:[#allocation5 + $0x90] sm:$0xff]
    %v280 = vld [vmem:[#allocation5 + $0x98] sm:$0xff]
    %v281 = vld [vmem:[#allocation5 + $0xa0] sm:$0xff]
    %v282 = vld [vmem:[#allocation5 + $0xa8] sm:$0xff]
    %v283 = vld [vmem:[#allocation5 + $0xb0] sm:$0xff]
    %v284 = vld [vmem:[#allocation5 + $0xb8] sm:$0xff]
    %v285 = vld [vmem:[#allocation5 + $0xc0] sm:$0xff]
    %v286 = vld [vmem:[#allocation5 + $0xc8] sm:$0xff]
    %v287 = vld [vmem:[#allocation5 + $0xd0] sm:$0xff]
    %v288 = vld [vmem:[#allocation5 + $0xd8] sm:$0xff]
    %v289 = vld [vmem:[#allocation5 + $0xe0] sm:$0xff]
    %v290 = vld [vmem:[#allocation5 + $0xe8] sm:$0xff]
    %v291 = vld [vmem:[#allocation5 + $0xf0] sm:$0xff]
    %v292 = vld [vmem:[#allocation5 + $0xf8] sm:$0xff]
    %v293 = vld [vmem:[#allocation5 + $0x100] sm:$0xff]
    %v294 = vld [vmem:[#allocation5 + $0x108] sm:$0xff]
    %v295 = vld [vmem:[#allocation5 + $0x110] sm:$0xff]
    %v296 = vld [vmem:[#allocation5 + $0x118] sm:$0xff]
    %v297 = vld [vmem:[#allocation5 + $0x120] sm:$0xff]
    %v298 = vld [vmem:[#allocation5 + $0x128] sm:$0xff]
    %v299 = vld [vmem:[#allocation5 + $0x130] sm:$0xff]
    %v300 = vld [vmem:[#allocation5 + $0x138] sm:$0xff]
    %v301 = vld [vmem:[#allocation5 + $0x140] sm:$0xff]
    %v302 = vld [vmem:[#allocation5 + $0x148] sm:$0xff]
    %v303 = vld [vmem:[#allocation5 + $0x150] sm:$0xff]
    %v304 = vld [vmem:[#allocation5 + $0x158] sm:$0xff]
    %v305 = vld [vmem:[#allocation5 + $0x160] sm:$0xff]
    %v306 = vld [vmem:[#allocation5 + $0x168] sm:$0xff]
    %v307 = vld [vmem:[#allocation5 + $0x170] sm:$0xff]
    %v308 = vld [vmem:[#allocation5 + $0x178] sm:$0xff]
    %v309 = vld [vmem:[#allocation5 + $0x180] sm:$0xff]
    %v310 = vld [vmem:[#allocation5 + $0x188] sm:$0xff]
    %v311 = vld [vmem:[#allocation5 + $0x190] sm:$0xff]
    %v312 = vld [vmem:[#allocation5 + $0x198] sm:$0xff]
    %v313 = vld [vmem:[#allocation5 + $0x1a0] sm:$0xff]
    %v314 = vld [vmem:[#allocation5 + $0x1a8] sm:$0xff]
    %v315 = vld [vmem:[#allocation5 + $0x1b0] sm:$0xff]
    %v316 = vld [vmem:[#allocation5 + $0x1b8] sm:$0xff]
    %v317 = vld [vmem:[#allocation5 + $0x1c0] sm:$0xff]
    %v318 = vld [vmem:[#allocation5 + $0x1c8] sm:$0xff]
    %v319 = vld [vmem:[#allocation5 + $0x1d0] sm:$0xff]
    %v320 = vld [vmem:[#allocation5 + $0x1d8] sm:$0xff]
    %v321 = vld [vmem:[#allocation5 + $0x1e0] sm:$0xff]
    %v322 = vld [vmem:[#allocation5 + $0x1e8] sm:$0xff]
    %v323 = vld [vmem:[#allocation5 + $0x1f0] sm:$0xff]
    %v324 = vld [vmem:[#allocation5 + $0x1f8] sm:$0xff]
    %v325 = vld [vmem:[#allocation5 + $0x200] sm:$0xff]
    %v326 = vld [vmem:[#allocation5 + $0x208] sm:$0xff]
    %v327 = vld [vmem:[#allocation5 + $0x210] sm:$0xff]
    %v328 = vld [vmem:[#allocation5 + $0x218] sm:$0xff]
    %v329 = vld [vmem:[#allocation5 + $0x220] sm:$0xff]
    %v330 = vld [vmem:[#allocation5 + $0x228] sm:$0xff]
    %v331 = vld [vmem:[#allocation5 + $0x230] sm:$0xff]
    %v332 = vld [vmem:[#allocation5 + $0x238] sm:$0xff]
    %v333 = vld [vmem:[#allocation5 + $0x240] sm:$0xff]
    %v334 = vld [vmem:[#allocation5 + $0x248] sm:$0xff]
    %v335 = vld [vmem:[#allocation5 + $0x250] sm:$0xff]
    %v336 = vld [vmem:[#allocation5 + $0x258] sm:$0xff]
    %v337 = vld [vmem:[#allocation5 + $0x260] sm:$0xff]
    %v338 = vld [vmem:[#allocation5 + $0x268] sm:$0xff]
    %v339 = vld [vmem:[#allocation5 + $0x270] sm:$0xff]
    %v340 = vld [vmem:[#allocation5 + $0x278] sm:$0xff]
    %v341 = vld [vmem:[#allocation5 + $0x280] sm:$0xff]
    %v342 = vld [vmem:[#allocation5 + $0x288] sm:$0xff]
    %v343 = vld [vmem:[#allocation5 + $0x290] sm:$0xff]
    %v344 = vld [vmem:[#allocation5 + $0x298] sm:$0xff]
    %v345 = vld [vmem:[#allocation5 + $0x2a0] sm:$0xff]
    %v346 = vld [vmem:[#allocation5 + $0x2a8] sm:$0xff]
    %v347 = vld [vmem:[#allocation5 + $0x2b0] sm:$0xff]
    %v348 = vld [vmem:[#allocation5 + $0x2b8] sm:$0xff]
    %v349 = vld [vmem:[#allocation5 + $0x2c0] sm:$0xff]
    %v350 = vld [vmem:[#allocation5 + $0x2c8] sm:$0xff]
    %v351 = vld [vmem:[#allocation5 + $0x2d0] sm:$0xff]
    %v352 = vld [vmem:[#allocation5 + $0x2d8] sm:$0xff]
    %v353 = vld [vmem:[#allocation5 + $0x2e0] sm:$0xff]
    %v354 = vld [vmem:[#allocation5 + $0x2e8] sm:$0xff]
    %v355 = vld [vmem:[#allocation5 + $0x2f0] sm:$0xff]
    %v356 = vld [vmem:[#allocation5 + $0x2f8] sm:$0xff]
    %v357 = vld [vmem:[#allocation5 + $0x300] sm:$0xff]
    %v358 = vld [vmem:[#allocation5 + $0x308] sm:$0xff]
    %v359 = vld [vmem:[#allocation5 + $0x310] sm:$0xff]
    %v360 = vld [vmem:[#allocation5 + $0x318] sm:$0xff]
    %v361 = vld [vmem:[#allocation5 + $0x320] sm:$0xff]
    %v362 = vld [vmem:[#allocation5 + $0x328] sm:$0xff]
    %v363 = vld [vmem:[#allocation5 + $0x330] sm:$0xff]
    %v364 = vld [vmem:[#allocation5 + $0x338] sm:$0xff]
    %v365 = vld [vmem:[#allocation5 + $0x340] sm:$0xff]
    %v366 = vld [vmem:[#allocation5 + $0x348] sm:$0xff]
    %v367 = vld [vmem:[#allocation5 + $0x350] sm:$0xff]
    %v368 = vld [vmem:[#allocation5 + $0x358] sm:$0xff]
    %v369 = vld [vmem:[#allocation5 + $0x360] sm:$0xff]
    %v370 = vld [vmem:[#allocation5 + $0x368] sm:$0xff]
    %v371 = vld [vmem:[#allocation5 + $0x370] sm:$0xff]
    %v372 = vld [vmem:[#allocation5 + $0x378] sm:$0xff]
    %v373 = vld [vmem:[#allocation5 + $0x380] sm:$0xff]
    %v374 = vld [vmem:[#allocation5 + $0x388] sm:$0xff]
    %v375 = vld [vmem:[#allocation5 + $0x390] sm:$0xff]
    %v376 = vld [vmem:[#allocation5 + $0x398] sm:$0xff]
    %v377 = vld [vmem:[#allocation5 + $0x3a0] sm:$0xff]
    %v378 = vld [vmem:[#allocation5 + $0x3a8] sm:$0xff]
    %v379 = vld [vmem:[#allocation5 + $0x3b0] sm:$0xff]
    %v380 = vld [vmem:[#allocation5 + $0x3b8] sm:$0xff]
    %v381 = vld [vmem:[#allocation5 + $0x3c0] sm:$0xff]
    %v382 = vld [vmem:[#allocation5 + $0x3c8] sm:$0xff]
    %v383 = vld [vmem:[#allocation5 + $0x3d0] sm:$0xff]
    %v384 = vld [vmem:[#allocation5 + $0x3d8] sm:$0xff]
    %v385 = vld [vmem:[#allocation5 + $0x3e0] sm:$0xff]
    %v386 = vld [vmem:[#allocation5 + $0x3e8] sm:$0xff]
    %v387 = vld [vmem:[#allocation5 + $0x3f0] sm:$0xff]
    %v388 = vld [vmem:[#allocation5 + $0x3f8] sm:$0xff]
    %v389 = vld [vmem:[#allocation5 + $0x400] sm:$0xff]
    %v390 = vld [vmem:[#allocation5 + $0x408] sm:$0xff]
    %v391 = vld [vmem:[#allocation5 + $0x410] sm:$0xff]
    %v392 = vld [vmem:[#allocation5 + $0x418] sm:$0xff]
    %v393 = vld [vmem:[#allocation5 + $0x420] sm:$0xff]
    %v394 = vld [vmem:[#allocation5 + $0x428] sm:$0xff]
    %v395 = vld [vmem:[#allocation5 + $0x430] sm:$0xff]
    %v396 = vld [vmem:[#allocation5 + $0x438] sm:$0xff]
    %v397 = vld [vmem:[#allocation5 + $0x440] sm:$0xff]
    %v398 = vld [vmem:[#allocation5 + $0x448] sm:$0xff]
    %v399 = vld [vmem:[#allocation5 + $0x450] sm:$0xff]
    %v400 = vld [vmem:[#allocation5 + $0x458] sm:$0xff]
    %v401 = vld [vmem:[#allocation5 + $0x460] sm:$0xff]
    %v402 = vld [vmem:[#allocation5 + $0x468] sm:$0xff]
    %v403 = vld [vmem:[#allocation5 + $0x470] sm:$0xff]
    %v404 = vld [vmem:[#allocation5 + $0x478] sm:$0xff]
    %v405 = vld [vmem:[#allocation5 + $0x480] sm:$0xff]
    %v406 = vld [vmem:[#allocation5 + $0x488] sm:$0xff]
    %v407 = vld [vmem:[#allocation5 + $0x490] sm:$0xff]
    %v408 = vld [vmem:[#allocation5 + $0x498] sm:$0xff]
    %v409 = vld [vmem:[#allocation5 + $0x4a0] sm:$0xff]
    %v410 = vld [vmem:[#allocation5 + $0x4a8] sm:$0xff]
    %v411 = vld [vmem:[#allocation5 + $0x4b0] sm:$0xff]
    %v412 = vld [vmem:[#allocation5 + $0x4b8] sm:$0xff]
    %v413 = vld [vmem:[#allocation5 + $0x4c0] sm:$0xff]
    %v414 = vld [vmem:[#allocation5 + $0x4c8] sm:$0xff]
    %v415 = vld [vmem:[#allocation5 + $0x4d0] sm:$0xff]
    %v416 = vld [vmem:[#allocation5 + $0x4d8] sm:$0xff]
    %v417 = vld [vmem:[#allocation5 + $0x4e0] sm:$0xff]
    %v418 = vld [vmem:[#allocation5 + $0x4e8] sm:$0xff]
    %v419 = vld [vmem:[#allocation5 + $0x4f0] sm:$0xff]
    %v420 = vld [vmem:[#allocation5 + $0x4f8] sm:$0xff]
    %v421 = vld [vmem:[#allocation5 + $0x500] sm:$0xff]
    %v422 = vld [vmem:[#allocation5 + $0x508] sm:$0xff]
    %v423 = vld [vmem:[#allocation5 + $0x510] sm:$0xff]
    %v424 = vld [vmem:[#allocation5 + $0x518] sm:$0xff]
    %v425 = vld [vmem:[#allocation5 + $0x520] sm:$0xff]
    %v426 = vld [vmem:[#allocation5 + $0x528] sm:$0xff]
    %v427 = vld [vmem:[#allocation5 + $0x530] sm:$0xff]
    %v428 = vld [vmem:[#allocation5 + $0x538] sm:$0xff]
    %v429 = vld [vmem:[#allocation5 + $0x540] sm:$0xff]
    %v430 = vld [vmem:[#allocation5 + $0x548] sm:$0xff]
    %v431 = vld [vmem:[#allocation5 + $0x550] sm:$0xff]
    %v432 = vld [vmem:[#allocation5 + $0x558] sm:$0xff]
    %v433 = vld [vmem:[#allocation5 + $0x560] sm:$0xff]
    %v434 = vld [vmem:[#allocation5 + $0x568] sm:$0xff]
    %v435 = vld [vmem:[#allocation5 + $0x570] sm:$0xff]
    %v436 = vld [vmem:[#allocation5 + $0x578] sm:$0xff]
    %v437 = vld [vmem:[#allocation5 + $0x580] sm:$0xff]
    %v438 = vld [vmem:[#allocation5 + $0x588] sm:$0xff]
    %v439 = vld [vmem:[#allocation5 + $0x590] sm:$0xff]
    %v440 = vld [vmem:[#allocation5 + $0x598] sm:$0xff]
    %v441 = vld [vmem:[#allocation5 + $0x5a0] sm:$0xff]
    %v442 = vld [vmem:[#allocation5 + $0x5a8] sm:$0xff]
    %v443 = vld [vmem:[#allocation5 + $0x5b0] sm:$0xff]
    %v444 = vld [vmem:[#allocation5 + $0x5b8] sm:$0xff]
    %v445 = vld [vmem:[#allocation5 + $0x5c0] sm:$0xff]
    %v446 = vld [vmem:[#allocation5 + $0x5c8] sm:$0xff]
    %v447 = vld [vmem:[#allocation5 + $0x5d0] sm:$0xff]
    %v448 = vld [vmem:[#allocation5 + $0x5d8] sm:$0xff]
    %v449 = vld [vmem:[#allocation5 + $0x5e0] sm:$0xff]
    %v450 = vld [vmem:[#allocation5 + $0x5e8] sm:$0xff]
    %v451 = vld [vmem:[#allocation5 + $0x5f0] sm:$0xff]
    %v452 = vld [vmem:[#allocation5 + $0x5f8] sm:$0xff]
    %v453 = vld [vmem:[#allocation5 + $0x600] sm:$0xff]
    %v454 = vld [vmem:[#allocation5 + $0x608] sm:$0xff]
    %v455 = vld [vmem:[#allocation5 + $0x610] sm:$0xff]
    %v456 = vld [vmem:[#allocation5 + $0x618] sm:$0xff]
    %v457 = vld [vmem:[#allocation5 + $0x620] sm:$0xff]
    %v458 = vld [vmem:[#allocation5 + $0x628] sm:$0xff]
    %v459 = vld [vmem:[#allocation5 + $0x630] sm:$0xff]
    %v460 = vld [vmem:[#allocation5 + $0x638] sm:$0xff]
    %v461 = vld [vmem:[#allocation5 + $0x640] sm:$0xff]
    %v462 = vld [vmem:[#allocation5 + $0x648] sm:$0xff]
    %v463 = vld [vmem:[#allocation5 + $0x650] sm:$0xff]
    %v464 = vld [vmem:[#allocation5 + $0x658] sm:$0xff]
    %v465 = vld [vmem:[#allocation5 + $0x660] sm:$0xff]
    %v466 = vld [vmem:[#allocation5 + $0x668] sm:$0xff]
    %v467 = vld [vmem:[#allocation5 + $0x670] sm:$0xff]
    %v468 = vld [vmem:[#allocation5 + $0x678] sm:$0xff]
    %v469 = vld [vmem:[#allocation5 + $0x680] sm:$0xff]
    %v470 = vld [vmem:[#allocation5 + $0x688] sm:$0xff]
    %v471 = vld [vmem:[#allocation5 + $0x690] sm:$0xff]
    %v472 = vld [vmem:[#allocation5 + $0x698] sm:$0xff]
    %v473 = vld [vmem:[#allocation5 + $0x6a0] sm:$0xff]
    %v474 = vld [vmem:[#allocation5 + $0x6a8] sm:$0xff]
    %v475 = vld [vmem:[#allocation5 + $0x6b0] sm:$0xff]
    %v476 = vld [vmem:[#allocation5 + $0x6b8] sm:$0xff]
    %v477 = vld [vmem:[#allocation5 + $0x6c0] sm:$0xff]
    %v478 = vld [vmem:[#allocation5 + $0x6c8] sm:$0xff]
    %v479 = vld [vmem:[#allocation5 + $0x6d0] sm:$0xff]
    %v480 = vld [vmem:[#allocation5 + $0x6d8] sm:$0xff]
    %v481 = vld [vmem:[#allocation5 + $0x6e0] sm:$0xff]
    %v482 = vld [vmem:[#allocation5 + $0x6e8] sm:$0xff]
    %v483 = vld [vmem:[#allocation5 + $0x6f0] sm:$0xff]
    %v484 = vld [vmem:[#allocation5 + $0x6f8] sm:$0xff]
    %v485 = vld [vmem:[#allocation5 + $0x700] sm:$0xff]
    %v486 = vld [vmem:[#allocation5 + $0x708] sm:$0xff]
    %v487 = vld [vmem:[#allocation5 + $0x710] sm:$0xff]
    %v488 = vld [vmem:[#allocation5 + $0x718] sm:$0xff]
    %v489 = vld [vmem:[#allocation5 + $0x720] sm:$0xff]
    %v490 = vld [vmem:[#allocation5 + $0x728] sm:$0xff]
    %v491 = vld [vmem:[#allocation5 + $0x730] sm:$0xff]
    %v492 = vld [vmem:[#allocation5 + $0x738] sm:$0xff]
    %v493 = vld [vmem:[#allocation5 + $0x740] sm:$0xff]
    %v494 = vld [vmem:[#allocation5 + $0x748] sm:$0xff]
    %v495 = vld [vmem:[#allocation5 + $0x750] sm:$0xff]
    %v496 = vld [vmem:[#allocation5 + $0x758] sm:$0xff]
    %v497 = vld [vmem:[#allocation5 + $0x760] sm:$0xff]
    %v498 = vld [vmem:[#allocation5 + $0x768] sm:$0xff]
    %v499 = vld [vmem:[#allocation5 + $0x770] sm:$0xff]
    %v500 = vld [vmem:[#allocation5 + $0x778] sm:$0xff]
    %v501 = vld [vmem:[#allocation5 + $0x780] sm:$0xff]
    %v502 = vld [vmem:[#allocation5 + $0x788] sm:$0xff]
    %v503 = vld [vmem:[#allocation5 + $0x790] sm:$0xff]
    %v504 = vld [vmem:[#allocation5 + $0x798] sm:$0xff]
    %v505 = vld [vmem:[#allocation5 + $0x7a0] sm:$0xff]
    %v506 = vld [vmem:[#allocation5 + $0x7a8] sm:$0xff]
    %v507 = vld [vmem:[#allocation5 + $0x7b0] sm:$0xff]
    %v508 = vld [vmem:[#allocation5 + $0x7b8] sm:$0xff]
    %v509 = vld [vmem:[#allocation5 + $0x7c0] sm:$0xff]
    %v510 = vld [vmem:[#allocation5 + $0x7c8] sm:$0xff]
    %v511 = vld [vmem:[#allocation5 + $0x7d0] sm:$0xff]
    %v512 = vld [vmem:[#allocation5 + $0x7d8] sm:$0xff]
    %v513 = vld [vmem:[#allocation5 + $0x7e0] sm:$0xff]
    %v514 = vld [vmem:[#allocation5 + $0x7e8] sm:$0xff]
    %v515 = vld [vmem:[#allocation5 + $0x7f0] sm:$0xff]
    %v516 = vld [vmem:[#allocation5 + $0x7f8] sm:$0xff]
    %v517 = vld [vmem:[#allocation5 + $0x800] sm:$0xff]
    %v518 = vld [vmem:[#allocation5 + $0x808] sm:$0xff]
    %v519 = vld [vmem:[#allocation5 + $0x810] sm:$0xff]
    %v520 = vld [vmem:[#allocation5 + $0x818] sm:$0xff]
    %v521 = vld [vmem:[#allocation5 + $0x820] sm:$0xff]
    %v522 = vld [vmem:[#allocation5 + $0x828] sm:$0xff]
    %v523 = vld [vmem:[#allocation5 + $0x830] sm:$0xff]
    %v524 = vld [vmem:[#allocation5 + $0x838] sm:$0xff]
    %v525 = vld [vmem:[#allocation5 + $0x840] sm:$0xff]
    %v526 = vld [vmem:[#allocation5 + $0x848] sm:$0xff]
    %v527 = vld [vmem:[#allocation5 + $0x850] sm:$0xff]
    %v528 = vld [vmem:[#allocation5 + $0x858] sm:$0xff]
    %v529 = vld [vmem:[#allocation5 + $0x860] sm:$0xff]
    %v530 = vld [vmem:[#allocation5 + $0x868] sm:$0xff]
    %v531 = vld [vmem:[#allocation5 + $0x870] sm:$0xff]
    %v532 = vld [vmem:[#allocation5 + $0x878] sm:$0xff]
    %v533 = vld [vmem:[#allocation5 + $0x880] sm:$0xff]
    %v534 = vld [vmem:[#allocation5 + $0x888] sm:$0xff]
    %v535 = vld [vmem:[#allocation5 + $0x890] sm:$0xff]
    %v536 = vld [vmem:[#allocation5 + $0x898] sm:$0xff]
    %v537 = vld [vmem:[#allocation5 + $0x8a0] sm:$0xff]
    %v538 = vld [vmem:[#allocation5 + $0x8a8] sm:$0xff]
    %v539 = vld [vmem:[#allocation5 + $0x8b0] sm:$0xff]
    %v540 = vld [vmem:[#allocation5 + $0x8b8] sm:$0xff]
    %v541 = vld [vmem:[#allocation5 + $0x8c0] sm:$0xff]
    %v542 = vld [vmem:[#allocation5 + $0x8c8] sm:$0xff]
    %v543 = vld [vmem:[#allocation5 + $0x8d0] sm:$0xff]
    %v544 = vld [vmem:[#allocation5 + $0x8d8] sm:$0xff]
    %v545 = vld [vmem:[#allocation5 + $0x8e0] sm:$0xff]
    %v546 = vld [vmem:[#allocation5 + $0x8e8] sm:$0xff]
    %v547 = vld [vmem:[#allocation5 + $0x8f0] sm:$0xff]
    %v548 = vld [vmem:[#allocation5 + $0x8f8] sm:$0xff]
    %v549 = vld [vmem:[#allocation5 + $0x900] sm:$0xff]
    %v550 = vld [vmem:[#allocation5 + $0x908] sm:$0xff]
    %v551 = vld [vmem:[#allocation5 + $0x910] sm:$0xff]
    %v552 = vld [vmem:[#allocation5 + $0x918] sm:$0xff]
    %v553 = vld [vmem:[#allocation5 + $0x920] sm:$0xff]
    %v554 = vld [vmem:[#allocation5 + $0x928] sm:$0xff]
    %v555 = vld [vmem:[#allocation5 + $0x930] sm:$0xff]
    %v556 = vld [vmem:[#allocation5 + $0x938] sm:$0xff]
    %v557 = vld [vmem:[#allocation5 + $0x940] sm:$0xff]
    %v558 = vld [vmem:[#allocation5 + $0x948] sm:$0xff]
    %v559 = vld [vmem:[#allocation5 + $0x950] sm:$0xff]
    %v560 = vld [vmem:[#allocation5 + $0x958] sm:$0xff]
    %v561 = vld [vmem:[#allocation5 + $0x960] sm:$0xff]
    %v562 = vld [vmem:[#allocation5 + $0x968] sm:$0xff]
    %v563 = vld [vmem:[#allocation5 + $0x970] sm:$0xff]
    %v564 = vld [vmem:[#allocation5 + $0x978] sm:$0xff]
    %v565 = vld [vmem:[#allocation5 + $0x980] sm:$0xff]
    %v566 = vld [vmem:[#allocation5 + $0x988] sm:$0xff]
    %v567 = vld [vmem:[#allocation5 + $0x990] sm:$0xff]
    %v568 = vld [vmem:[#allocation5 + $0x998] sm:$0xff]
    %v569 = vld [vmem:[#allocation5 + $0x9a0] sm:$0xff]
    %v570 = vld [vmem:[#allocation5 + $0x9a8] sm:$0xff]
    %v571 = vld [vmem:[#allocation5 + $0x9b0] sm:$0xff]
    %v572 = vld [vmem:[#allocation5 + $0x9b8] sm:$0xff]
    %v573 = vld [vmem:[#allocation5 + $0x9c0] sm:$0xff]
    %v574 = vld [vmem:[#allocation5 + $0x9c8] sm:$0xff]
    %v575 = vld [vmem:[#allocation5 + $0x9d0] sm:$0xff]
    %v576 = vld [vmem:[#allocation5 + $0x9d8] sm:$0xff]
    %v577 = vld [vmem:[#allocation5 + $0x9e0] sm:$0xff]
    %v578 = vld [vmem:[#allocation5 + $0x9e8] sm:$0xff]
    %v579 = vld [vmem:[#allocation5 + $0x9f0] sm:$0xff]
    %v580 = vld [vmem:[#allocation5 + $0x9f8] sm:$0xff]
    %v581 = vld [vmem:[#allocation5 + $0xa00] sm:$0xff]
    %v582 = vld [vmem:[#allocation5 + $0xa08] sm:$0xff]
    %v583 = vld [vmem:[#allocation5 + $0xa10] sm:$0xff]
    %v584 = vld [vmem:[#allocation5 + $0xa18] sm:$0xff]
    %v585 = vld [vmem:[#allocation5 + $0xa20] sm:$0xff]
    %v586 = vld [vmem:[#allocation5 + $0xa28] sm:$0xff]
    %v587 = vld [vmem:[#allocation5 + $0xa30] sm:$0xff]
    %v588 = vld [vmem:[#allocation5 + $0xa38] sm:$0xff]
    %v589 = vld [vmem:[#allocation5 + $0xa40] sm:$0xff]
    %v590 = vld [vmem:[#allocation5 + $0xa48] sm:$0xff]
    %v591 = vld [vmem:[#allocation5 + $0xa50] sm:$0xff]
    %v592 = vld [vmem:[#allocation5 + $0xa58] sm:$0xff]
    %v593 = vld [vmem:[#allocation5 + $0xa60] sm:$0xff]
    %v594 = vld [vmem:[#allocation5 + $0xa68] sm:$0xff]
    %v595 = vld [vmem:[#allocation5 + $0xa70] sm:$0xff]
    %v596 = vld [vmem:[#allocation5 + $0xa78] sm:$0xff]
    %v597 = vld [vmem:[#allocation5 + $0xa80] sm:$0xff]
    %v598 = vld [vmem:[#allocation5 + $0xa88] sm:$0xff]
    %v599 = vld [vmem:[#allocation5 + $0xa90] sm:$0xff]
    %v600 = vld [vmem:[#allocation5 + $0xa98] sm:$0xff]
    %v601 = vld [vmem:[#allocation5 + $0xaa0] sm:$0xff]
    %v602 = vld [vmem:[#allocation5 + $0xaa8] sm:$0xff]
    %v603 = vld [vmem:[#allocation5 + $0xab0] sm:$0xff]
    %v604 = vld [vmem:[#allocation5 + $0xab8] sm:$0xff]
    %v605 = vld [vmem:[#allocation5 + $0xac0] sm:$0xff]
    %v606 = vld [vmem:[#allocation5 + $0xac8] sm:$0xff]
    %v607 = vld [vmem:[#allocation5 + $0xad0] sm:$0xff]
    %v608 = vld [vmem:[#allocation5 + $0xad8] sm:$0xff]
    %v609 = vld [vmem:[#allocation5 + $0xae0] sm:$0xff]
    %v610 = vld [vmem:[#allocation5 + $0xae8] sm:$0xff]
    %v611 = vld [vmem:[#allocation5 + $0xaf0] sm:$0xff]
    %v612 = vld [vmem:[#allocation5 + $0xaf8] sm:$0xff]
    %v613 = vld [vmem:[#allocation5 + $0xb00] sm:$0xff]
    %v614 = vld [vmem:[#allocation5 + $0xb08] sm:$0xff]
    %v615 = vld [vmem:[#allocation5 + $0xb10] sm:$0xff]
    %v616 = vld [vmem:[#allocation5 + $0xb18] sm:$0xff]
    %v617 = vld [vmem:[#allocation5 + $0xb20] sm:$0xff]
    %v618 = vld [vmem:[#allocation5 + $0xb28] sm:$0xff]
    %v619 = vld [vmem:[#allocation5 + $0xb30] sm:$0xff]
    %v620 = vld [vmem:[#allocation5 + $0xb38] sm:$0xff]
    %v621 = vld [vmem:[#allocation5 + $0xb40] sm:$0xff]
    %v622 = vld [vmem:[#allocation5 + $0xb48] sm:$0xff]
    %v623 = vld [vmem:[#allocation5 + $0xb50] sm:$0xff]
    %v624 = vld [vmem:[#allocation5 + $0xb58] sm:$0xff]
    %v625 = vld [vmem:[#allocation5 + $0xb60] sm:$0xff]
    %v626 = vld [vmem:[#allocation5 + $0xb68] sm:$0xff]
    %v627 = vld [vmem:[#allocation5 + $0xb70] sm:$0xff]
    %v628 = vld [vmem:[#allocation5 + $0xb78] sm:$0xff]
    %v629 = vld [vmem:[#allocation5 + $0xb80] sm:$0xff]
    %v630 = vld [vmem:[#allocation5 + $0xb88] sm:$0xff]
    %v631 = vld [vmem:[#allocation5 + $0xb90] sm:$0xff]
    %v632 = vld [vmem:[#allocation5 + $0xb98] sm:$0xff]
    %v633 = vld [vmem:[#allocation5 + $0xba0] sm:$0xff]
    %v634 = vld [vmem:[#allocation5 + $0xba8] sm:$0xff]
    %v635 = vld [vmem:[#allocation5 + $0xbb0] sm:$0xff]
    %v636 = vld [vmem:[#allocation5 + $0xbb8] sm:$0xff]
    %v637 = vld [vmem:[#allocation5 + $0xbc0] sm:$0xff]
    %v638 = vld [vmem:[#allocation5 + $0xbc8] sm:$0xff]
    %v639 = vld [vmem:[#allocation5 + $0xbd0] sm:$0xff]
    %v640 = vld [vmem:[#allocation5 + $0xbd8] sm:$0xff]
    %v641 = vld [vmem:[#allocation5 + $0xbe0] sm:$0xff]
    %v642 = vld [vmem:[#allocation5 + $0xbe8] sm:$0xff]
    %v643 = vld [vmem:[#allocation5 + $0xbf0] sm:$0xff]
    %v644 = vld [vmem:[#allocation5 + $0xbf8] sm:$0xff]
    %v645 = vld [vmem:[#allocation5 + $0xc00] sm:$0xff]
    %v646 = vld [vmem:[#allocation5 + $0xc08] sm:$0xff]
    %v647 = vld [vmem:[#allocation5 + $0xc10] sm:$0xff]
    %v648 = vld [vmem:[#allocation5 + $0xc18] sm:$0xff]
    %v649 = vld [vmem:[#allocation5 + $0xc20] sm:$0xff]
    %v650 = vld [vmem:[#allocation5 + $0xc28] sm:$0xff]
    %v651 = vld [vmem:[#allocation5 + $0xc30] sm:$0xff]
    %v652 = vld [vmem:[#allocation5 + $0xc38] sm:$0xff]
    %v653 = vld [vmem:[#allocation5 + $0xc40] sm:$0xff]
    %v654 = vld [vmem:[#allocation5 + $0xc48] sm:$0xff]
    %v655 = vld [vmem:[#allocation5 + $0xc50] sm:$0xff]
    %v656 = vld [vmem:[#allocation5 + $0xc58] sm:$0xff]
    %v657 = vld [vmem:[#allocation5 + $0xc60] sm:$0xff]
    %v658 = vld [vmem:[#allocation5 + $0xc68] sm:$0xff]
    %v659 = vld [vmem:[#allocation5 + $0xc70] sm:$0xff]
    %v660 = vld [vmem:[#allocation5 + $0xc78] sm:$0xff]
    %v661 = vld [vmem:[#allocation5 + $0xc80] sm:$0xff]
    %v662 = vld [vmem:[#allocation5 + $0xc88] sm:$0xff]
    %v663 = vld [vmem:[#allocation5 + $0xc90] sm:$0xff]
    %v664 = vld [vmem:[#allocation5 + $0xc98] sm:$0xff]
    %v665 = vld [vmem:[#allocation5 + $0xca0] sm:$0xff]
    %v666 = vld [vmem:[#allocation5 + $0xca8] sm:$0xff]
    %v667 = vld [vmem:[#allocation5 + $0xcb0] sm:$0xff]
    %v668 = vld [vmem:[#allocation5 + $0xcb8] sm:$0xff]
    %v669 = vld [vmem:[#allocation5 + $0xcc0] sm:$0xff]
    %v670 = vld [vmem:[#allocation5 + $0xcc8] sm:$0xff]
    %v671 = vld [vmem:[#allocation5 + $0xcd0] sm:$0xff]
    %v672 = vld [vmem:[#allocation5 + $0xcd8] sm:$0xff]
    %v673 = vld [vmem:[#allocation5 + $0xce0] sm:$0xff]
    %v674 = vld [vmem:[#allocation5 + $0xce8] sm:$0xff]
    %v675 = vld [vmem:[#allocation5 + $0xcf0] sm:$0xff]
    %v676 = vld [vmem:[#allocation5 + $0xcf8] sm:$0xff]
    %v677 = vld [vmem:[#allocation5 + $0xd00] sm:$0xff]
    %v678 = vld [vmem:[#allocation5 + $0xd08] sm:$0xff]
    %v679 = vld [vmem:[#allocation5 + $0xd10] sm:$0xff]
    %v680 = vld [vmem:[#allocation5 + $0xd18] sm:$0xff]
    %v681 = vld [vmem:[#allocation5 + $0xd20] sm:$0xff]
    %v682 = vld [vmem:[#allocation5 + $0xd28] sm:$0xff]
    %v683 = vld [vmem:[#allocation5 + $0xd30] sm:$0xff]
    %v684 = vld [vmem:[#allocation5 + $0xd38] sm:$0xff]
    %v685 = vld [vmem:[#allocation5 + $0xd40] sm:$0xff]
    %v686 = vld [vmem:[#allocation5 + $0xd48] sm:$0xff]
    %v687 = vld [vmem:[#allocation5 + $0xd50] sm:$0xff]
    %v688 = vld [vmem:[#allocation5 + $0xd58] sm:$0xff]
    %v689 = vld [vmem:[#allocation5 + $0xd60] sm:$0xff]
    %v690 = vld [vmem:[#allocation5 + $0xd68] sm:$0xff]
    %v691 = vld [vmem:[#allocation5 + $0xd70] sm:$0xff]
    %v692 = vld [vmem:[#allocation5 + $0xd78] sm:$0xff]
    %v693 = vld [vmem:[#allocation5 + $0xd80] sm:$0xff]
    %v694 = vld [vmem:[#allocation5 + $0xd88] sm:$0xff]
    %v695 = vld [vmem:[#allocation5 + $0xd90] sm:$0xff]
    %v696 = vld [vmem:[#allocation5 + $0xd98] sm:$0xff]
    %v697 = vld [vmem:[#allocation5 + $0xda0] sm:$0xff]
    %v698 = vld [vmem:[#allocation5 + $0xda8] sm:$0xff]
    %v699 = vld [vmem:[#allocation5 + $0xdb0] sm:$0xff]
    %v700 = vld [vmem:[#allocation5 + $0xdb8] sm:$0xff]
    %v701 = vld [vmem:[#allocation5 + $0xdc0] sm:$0xff]
    %v702 = vld [vmem:[#allocation5 + $0xdc8] sm:$0xff]
    %v703 = vld [vmem:[#allocation5 + $0xdd0] sm:$0xff]
    %v704 = vld [vmem:[#allocation5 + $0xdd8] sm:$0xff]
    %v705 = vld [vmem:[#allocation5 + $0xde0] sm:$0xff]
    %v706 = vld [vmem:[#allocation5 + $0xde8] sm:$0xff]
    %v707 = vld [vmem:[#allocation5 + $0xdf0] sm:$0xff]
    %v708 = vld [vmem:[#allocation5 + $0xdf8] sm:$0xff]
    %v709 = vld [vmem:[#allocation5 + $0xe00] sm:$0xff]
    %v710 = vld [vmem:[#allocation5 + $0xe08] sm:$0xff]
    %v711 = vld [vmem:[#allocation5 + $0xe10] sm:$0xff]
    %v712 = vld [vmem:[#allocation5 + $0xe18] sm:$0xff]
    %v713 = vld [vmem:[#allocation5 + $0xe20] sm:$0xff]
    %v714 = vld [vmem:[#allocation5 + $0xe28] sm:$0xff]
    %v715 = vld [vmem:[#allocation5 + $0xe30] sm:$0xff]
    %v716 = vld [vmem:[#allocation5 + $0xe38] sm:$0xff]
    %v717 = vld [vmem:[#allocation5 + $0xe40] sm:$0xff]
    %v718 = vld [vmem:[#allocation5 + $0xe48] sm:$0xff]
    %v719 = vld [vmem:[#allocation5 + $0xe50] sm:$0xff]
    %v720 = vld [vmem:[#allocation5 + $0xe58] sm:$0xff]
    %v721 = vld [vmem:[#allocation5 + $0xe60] sm:$0xff]
    %v722 = vld [vmem:[#allocation5 + $0xe68] sm:$0xff]
    %v723 = vld [vmem:[#allocation5 + $0xe70] sm:$0xff]
    %v724 = vld [vmem:[#allocation5 + $0xe78] sm:$0xff]
    %v725 = vld [vmem:[#allocation5 + $0xe80] sm:$0xff]
    %v726 = vld [vmem:[#allocation5 + $0xe88] sm:$0xff]
    %v727 = vld [vmem:[#allocation5 + $0xe90] sm:$0xff]
    %v728 = vld [vmem:[#allocation5 + $0xe98] sm:$0xff]
    %v729 = vld [vmem:[#allocation5 + $0xea0] sm:$0xff]
    %v730 = vld [vmem:[#allocation5 + $0xea8] sm:$0xff]
    %v731 = vld [vmem:[#allocation5 + $0xeb0] sm:$0xff]
    %v732 = vld [vmem:[#allocation5 + $0xeb8] sm:$0xff]
    %v733 = vld [vmem:[#allocation5 + $0xec0] sm:$0xff]
    %v734 = vld [vmem:[#allocation5 + $0xec8] sm:$0xff]
    %v735 = vld [vmem:[#allocation5 + $0xed0] sm:$0xff]
    %v736 = vld [vmem:[#allocation5 + $0xed8] sm:$0xff]
    %v737 = vld [vmem:[#allocation5 + $0xee0] sm:$0xff]
    %v738 = vld [vmem:[#allocation5 + $0xee8] sm:$0xff]
    %v739 = vld [vmem:[#allocation5 + $0xef0] sm:$0xff]
    %v740 = vld [vmem:[#allocation5 + $0xef8] sm:$0xff]
    %v741 = vld [vmem:[#allocation5 + $0xf00] sm:$0xff]
    %v742 = vld [vmem:[#allocation5 + $0xf08] sm:$0xff]
    %v743 = vld [vmem:[#allocation5 + $0xf10] sm:$0xff]
    %v744 = vld [vmem:[#allocation5 + $0xf18] sm:$0xff]
    %v745 = vld [vmem:[#allocation5 + $0xf20] sm:$0xff]
    %v746 = vld [vmem:[#allocation5 + $0xf28] sm:$0xff]
    %v747 = vld [vmem:[#allocation5 + $0xf30] sm:$0xff]
    %v748 = vld [vmem:[#allocation5 + $0xf38] sm:$0xff]
    %v749 = vld [vmem:[#allocation5 + $0xf40] sm:$0xff]
    %v750 = vld [vmem:[#allocation5 + $0xf48] sm:$0xff]
    %v751 = vld [vmem:[#allocation5 + $0xf50] sm:$0xff]
    %v752 = vld [vmem:[#allocation5 + $0xf58] sm:$0xff]
    %v753 = vld [vmem:[#allocation5 + $0xf60] sm:$0xff]
    %v754 = vld [vmem:[#allocation5 + $0xf68] sm:$0xff]
    %v755 = vld [vmem:[#allocation5 + $0xf70] sm:$0xff]
    %v756 = vld [vmem:[#allocation5 + $0xf78] sm:$0xff]
    %v757 = vld [vmem:[#allocation5 + $0xf80] sm:$0xff]
    %v758 = vld [vmem:[#allocation5 + $0xf88] sm:$0xff]
    %v759 = vld [vmem:[#allocation5 + $0xf90] sm:$0xff]
    %v760 = vld [vmem:[#allocation5 + $0xf98] sm:$0xff]
    %v761 = vld [vmem:[#allocation5 + $0xfa0] sm:$0xff]
    %v762 = vld [vmem:[#allocation5 + $0xfa8] sm:$0xff]
    %v763 = vld [vmem:[#allocation5 + $0xfb0] sm:$0xff]
    %v764 = vld [vmem:[#allocation5 + $0xfb8] sm:$0xff]
    %v765 = vld [vmem:[#allocation5 + $0xfc0] sm:$0xff]
    %v766 = vld [vmem:[#allocation5 + $0xfc8] sm:$0xff]
    %v767 = vld [vmem:[#allocation5 + $0xfd0] sm:$0xff]
    %v768 = vld [vmem:[#allocation5 + $0xfd8] sm:$0xff]
    %v769 = vld [vmem:[#allocation5 + $0xfe0] sm:$0xff]
    %v770 = vld [vmem:[#allocation5 + $0xfe8] sm:$0xff]
    %v771 = vld [vmem:[#allocation5 + $0xff0] sm:$0xff]
    %v772 = vld [vmem:[#allocation5 + $0xff8] sm:$0xff]
    %v773 = vld [vmem:[#allocation5 + $0x1000] sm:$0xff]
    %v774 = vld [vmem:[#allocation5 + $0x1008] sm:$0xff]
    %v775 = vld [vmem:[#allocation5 + $0x1010] sm:$0xff]
    %v776 = vld [vmem:[#allocation5 + $0x1018] sm:$0xff]
    %v777 = vld [vmem:[#allocation5 + $0x1020] sm:$0xff]
    %v778 = vld [vmem:[#allocation5 + $0x1028] sm:$0xff]
    %v779 = vld [vmem:[#allocation5 + $0x1030] sm:$0xff]
    %v780 = vld [vmem:[#allocation5 + $0x1038] sm:$0xff]
    %v781 = vld [vmem:[#allocation5 + $0x1040] sm:$0xff]
    %v782 = vld [vmem:[#allocation5 + $0x1048] sm:$0xff]
    %v783 = vld [vmem:[#allocation5 + $0x1050] sm:$0xff]
    %v784 = vld [vmem:[#allocation5 + $0x1058] sm:$0xff]
    %v785 = vld [vmem:[#allocation5 + $0x1060] sm:$0xff]
    %v786 = vld [vmem:[#allocation5 + $0x1068] sm:$0xff]
    %v787 = vld [vmem:[#allocation5 + $0x1070] sm:$0xff]
    %v788 = vld [vmem:[#allocation5 + $0x1078] sm:$0xff]
    %v789 = vld [vmem:[#allocation5 + $0x1080] sm:$0xff]
    %v790 = vld [vmem:[#allocation5 + $0x1088] sm:$0xff]
    %v791 = vld [vmem:[#allocation5 + $0x1090] sm:$0xff]
    %v792 = vld [vmem:[#allocation5 + $0x1098] sm:$0xff]
    %v793 = vld [vmem:[#allocation5 + $0x10a0] sm:$0xff]
    %v794 = vld [vmem:[#allocation5 + $0x10a8] sm:$0xff]
    %v795 = vld [vmem:[#allocation5 + $0x10b0] sm:$0xff]
    %v796 = vld [vmem:[#allocation5 + $0x10b8] sm:$0xff]
    %v797 = vld [vmem:[#allocation5 + $0x10c0] sm:$0xff]
    %v798 = vld [vmem:[#allocation5 + $0x10c8] sm:$0xff]
    %v799 = vld [vmem:[#allocation5 + $0x10d0] sm:$0xff]
    %v800 = vld [vmem:[#allocation5 + $0x10d8] sm:$0xff]
    %v801 = vld [vmem:[#allocation5 + $0x10e0] sm:$0xff]
    %v802 = vld [vmem:[#allocation5 + $0x10e8] sm:$0xff]
    %v803 = vld [vmem:[#allocation5 + $0x10f0] sm:$0xff]
    %v804 = vld [vmem:[#allocation5 + $0x10f8] sm:$0xff]
    %v805 = vld [vmem:[#allocation5 + $0x1100] sm:$0xff]
    %v806 = vld [vmem:[#allocation5 + $0x1108] sm:$0xff]
    %v807 = vld [vmem:[#allocation5 + $0x1110] sm:$0xff]
    %v808 = vld [vmem:[#allocation5 + $0x1118] sm:$0xff]
    %v809 = vld [vmem:[#allocation5 + $0x1120] sm:$0xff]
    %v810 = vld [vmem:[#allocation5 + $0x1128] sm:$0xff]
    %v811 = vld [vmem:[#allocation5 + $0x1130] sm:$0xff]
    %v812 = vld [vmem:[#allocation5 + $0x1138] sm:$0xff]
    %v813 = vld [vmem:[#allocation5 + $0x1140] sm:$0xff]
    %v814 = vld [vmem:[#allocation5 + $0x1148] sm:$0xff]
    %v815 = vld [vmem:[#allocation5 + $0x1150] sm:$0xff]
    %v816 = vld [vmem:[#allocation5 + $0x1158] sm:$0xff]
    %v817 = vld [vmem:[#allocation5 + $0x1160] sm:$0xff]
    %v818 = vld [vmem:[#allocation5 + $0x1168] sm:$0xff]
    %v819 = vld [vmem:[#allocation5 + $0x1170] sm:$0xff]
    %v820 = vld [vmem:[#allocation5 + $0x1178] sm:$0xff]
    %v821 = vld [vmem:[#allocation5 + $0x1180] sm:$0xff]
    %v822 = vld [vmem:[#allocation5 + $0x1188] sm:$0xff]
    %v823 = vld [vmem:[#allocation5 + $0x1190] sm:$0xff]
    %v824 = vld [vmem:[#allocation5 + $0x1198] sm:$0xff]
    %v825 = vld [vmem:[#allocation5 + $0x11a0] sm:$0xff]
    %v826 = vld [vmem:[#allocation5 + $0x11a8] sm:$0xff]
    %v827 = vld [vmem:[#allocation5 + $0x11b0] sm:$0xff]
    %v828 = vld [vmem:[#allocation5 + $0x11b8] sm:$0xff]
    %v829 = vld [vmem:[#allocation5 + $0x11c0] sm:$0xff]
    %v830 = vld [vmem:[#allocation5 + $0x11c8] sm:$0xff]
    %v831 = vld [vmem:[#allocation5 + $0x11d0] sm:$0xff]
    %v832 = vld [vmem:[#allocation5 + $0x11d8] sm:$0xff]
    %v833 = vld [vmem:[#allocation5 + $0x11e0] sm:$0xff]
    %v834 = vld [vmem:[#allocation5 + $0x11e8] sm:$0xff]
    %v835 = vld [vmem:[#allocation5 + $0x11f0] sm:$0xff]
    %v836 = vld [vmem:[#allocation5 + $0x11f8] sm:$0xff]
    %837 = vmatpush.msra.mxu0 %v276
    %838 = vmatpush.msra.mxu0 %v275
    %839 = vmatpush.msra.mxu0 %v274
    %840 = vmatpush.msra.mxu0 %v273
    %841 = vmatpush.msra.mxu0 %v272
    %842 = vmatpush.msra.mxu0 %v271
    %843 = vmatpush.msra.mxu0 %v270
    %844 = vmatpush.msra.mxu0 %v269
    %845 = vmatpush.msra.mxu0 %v268
    %846 = vmatpush.msra.mxu0 %v267
    %847 = vmatpush.msra.mxu0 %v266
    %848 = vmatpush.msra.mxu0 %v265
    %849 = vmatpush.msra.mxu0 %v264
    %850 = vmatpush.msra.mxu0 %v263
    %851 = vmatpush.msra.mxu0 %v262
    %852 = vmatpush.msra.mxu0 %v261
    %853 = vmatmul.f32.gmra.mxu0 %v50
    %v854 = vpop.f32.mrf.mxu0
    %v855 = vadd.f32 0.0, %v854
    %856 = vdwg.mxu0
    %857 = vmatpush.msra.mxu0 %v292
    %858 = vmatpush.msra.mxu0 %v291
    %859 = vmatpush.msra.mxu0 %v290
    %860 = vmatpush.msra.mxu0 %v289
    %861 = vmatpush.msra.mxu0 %v288
    %862 = vmatpush.msra.mxu0 %v287
    %863 = vmatpush.msra.mxu0 %v286
    %864 = vmatpush.msra.mxu0 %v285
    %865 = vmatpush.msra.mxu0 %v284
    %866 = vmatpush.msra.mxu0 %v283
    %867 = vmatpush.msra.mxu0 %v282
    %868 = vmatpush.msra.mxu0 %v281
    %869 = vmatpush.msra.mxu0 %v280
    %870 = vmatpush.msra.mxu0 %v279
    %871 = vmatpush.msra.mxu0 %v278
    %872 = vmatpush.msra.mxu0 %v277
    %873 = vmatmul.f32.gmra.mxu0 %v56
    %v874 = vpop.f32.mrf.mxu0
    %v875 = vadd.f32 %v855, %v874
    %876 = vdwg.mxu0
    %877 = vmatpush.msra.mxu0 %v308
    %878 = vmatpush.msra.mxu0 %v307
    %879 = vmatpush.msra.mxu0 %v306
    %880 = vmatpush.msra.mxu0 %v305
    %881 = vmatpush.msra.mxu0 %v304
    %882 = vmatpush.msra.mxu0 %v303
    %883 = vmatpush.msra.mxu0 %v302
    %884 = vmatpush.msra.mxu0 %v301
    %885 = vmatpush.msra.mxu0 %v300
    %886 = vmatpush.msra.mxu0 %v299
    %887 = vmatpush.msra.mxu0 %v298
    %888 = vmatpush.msra.mxu0 %v297
    %889 = vmatpush.msra.mxu0 %v296
    %890 = vmatpush.msra.mxu0 %v295
    %891 = vmatpush.msra.mxu0 %v294
    %892 = vmatpush.msra.mxu0 %v293
    %893 = vmatmul.f32.gmra.mxu0 %v62
    %v894 = vpop.f32.mrf.mxu0
    %v895 = vadd.f32 %v875, %v894
    %896 = vdwg.mxu0
    %897 = vmatpush.msra.mxu0 %v324
    %898 = vmatpush.msra.mxu0 %v323
    %899 = vmatpush.msra.mxu0 %v322
    %900 = vmatpush.msra.mxu0 %v321
    %901 = vmatpush.msra.mxu0 %v320
    %902 = vmatpush.msra.mxu0 %v319
    %903 = vmatpush.msra.mxu0 %v318
    %904 = vmatpush.msra.mxu0 %v317
    %905 = vmatpush.msra.mxu0 %v316
    %906 = vmatpush.msra.mxu0 %v315
    %907 = vmatpush.msra.mxu0 %v314
    %908 = vmatpush.msra.mxu0 %v313
    %909 = vmatpush.msra.mxu0 %v312
    %910 = vmatpush.msra.mxu0 %v311
    %911 = vmatpush.msra.mxu0 %v310
    %912 = vmatpush.msra.mxu0 %v309
    %913 = vmatmul.f32.gmra.mxu0 %v68
    %v914 = vpop.f32.mrf.mxu0
    %v915 = vadd.f32 %v895, %v914
    %916 = vdwg.mxu0
    %917 = vmatpush.msra.mxu0 %v340
    %918 = vmatpush.msra.mxu0 %v339
    %919 = vmatpush.msra.mxu0 %v338
    %920 = vmatpush.msra.mxu0 %v337
    %921 = vmatpush.msra.mxu0 %v336
    %922 = vmatpush.msra.mxu0 %v335
    %923 = vmatpush.msra.mxu0 %v334
    %924 = vmatpush.msra.mxu0 %v333
    %925 = vmatpush.msra.mxu0 %v332
    %926 = vmatpush.msra.mxu0 %v331
    %927 = vmatpush.msra.mxu0 %v330
    %928 = vmatpush.msra.mxu0 %v329
    %929 = vmatpush.msra.mxu0 %v328
    %930 = vmatpush.msra.mxu0 %v327
    %931 = vmatpush.msra.mxu0 %v326
    %932 = vmatpush.msra.mxu0 %v325
    %933 = vmatmul.f32.gmra.mxu0 %v74
    %v934 = vpop.f32.mrf.mxu0
    %v935 = vadd.f32 %v915, %v934
    %936 = vdwg.mxu0
    %937 = vmatpush.msra.mxu0 %v356
    %938 = vmatpush.msra.mxu0 %v355
    %939 = vmatpush.msra.mxu0 %v354
    %940 = vmatpush.msra.mxu0 %v353
    %941 = vmatpush.msra.mxu0 %v352
    %942 = vmatpush.msra.mxu0 %v351
    %943 = vmatpush.msra.mxu0 %v350
    %944 = vmatpush.msra.mxu0 %v349
    %945 = vmatpush.msra.mxu0 %v348
    %946 = vmatpush.msra.mxu0 %v347
    %947 = vmatpush.msra.mxu0 %v346
    %948 = vmatpush.msra.mxu0 %v345
    %949 = vmatpush.msra.mxu0 %v344
    %950 = vmatpush.msra.mxu0 %v343
    %951 = vmatpush.msra.mxu0 %v342
    %952 = vmatpush.msra.mxu0 %v341
    %953 = vmatmul.f32.gmra.mxu0 %v80
    %v954 = vpop.f32.mrf.mxu0
    %v955 = vadd.f32 %v935, %v954
    %956 = vdwg.mxu0
    %957 = vmatpush.msra.mxu0 %v372
    %958 = vmatpush.msra.mxu0 %v371
    %959 = vmatpush.msra.mxu0 %v370
    %960 = vmatpush.msra.mxu0 %v369
    %961 = vmatpush.msra.mxu0 %v368
    %962 = vmatpush.msra.mxu0 %v367
    %963 = vmatpush.msra.mxu0 %v366
    %964 = vmatpush.msra.mxu0 %v365
    %965 = vmatpush.msra.mxu0 %v364
    %966 = vmatpush.msra.mxu0 %v363
    %967 = vmatpush.msra.mxu0 %v362
    %968 = vmatpush.msra.mxu0 %v361
    %969 = vmatpush.msra.mxu0 %v360
    %970 = vmatpush.msra.mxu0 %v359
    %971 = vmatpush.msra.mxu0 %v358
    %972 = vmatpush.msra.mxu0 %v357
    %973 = vmatmul.f32.gmra.mxu0 %v86
    %v974 = vpop.f32.mrf.mxu0
    %v975 = vadd.f32 %v955, %v974
    %976 = vdwg.mxu0
    %977 = vmatpush.msra.mxu0 %v388
    %978 = vmatpush.msra.mxu0 %v387
    %979 = vmatpush.msra.mxu0 %v386
    %980 = vmatpush.msra.mxu0 %v385
    %981 = vmatpush.msra.mxu0 %v384
    %982 = vmatpush.msra.mxu0 %v383
    %983 = vmatpush.msra.mxu0 %v382
    %984 = vmatpush.msra.mxu0 %v381
    %985 = vmatpush.msra.mxu0 %v380
    %986 = vmatpush.msra.mxu0 %v379
    %987 = vmatpush.msra.mxu0 %v378
    %988 = vmatpush.msra.mxu0 %v377
    %989 = vmatpush.msra.mxu0 %v376
    %990 = vmatpush.msra.mxu0 %v375
    %991 = vmatpush.msra.mxu0 %v374
    %992 = vmatpush.msra.mxu0 %v373
    %993 = vmatmul.f32.gmra.mxu0 %v92
    %v994 = vpop.f32.mrf.mxu0
    %v995 = vadd.f32 %v975, %v994
    %996 = vdwg.mxu0
    %997 = vmatpush.msra.mxu0 %v404
    %998 = vmatpush.msra.mxu0 %v403
    %999 = vmatpush.msra.mxu0 %v402
    %1000 = vmatpush.msra.mxu0 %v401
    %1001 = vmatpush.msra.mxu0 %v400
    %1002 = vmatpush.msra.mxu0 %v399
    %1003 = vmatpush.msra.mxu0 %v398
    %1004 = vmatpush.msra.mxu0 %v397
    %1005 = vmatpush.msra.mxu0 %v396
    %1006 = vmatpush.msra.mxu0 %v395
    %1007 = vmatpush.msra.mxu0 %v394
    %1008 = vmatpush.msra.mxu0 %v393
    %1009 = vmatpush.msra.mxu0 %v392
    %1010 = vmatpush.msra.mxu0 %v391
    %1011 = vmatpush.msra.mxu0 %v390
    %1012 = vmatpush.msra.mxu0 %v389
    %1013 = vmatmul.f32.gmra.mxu0 %v98
    %v1014 = vpop.f32.mrf.mxu0
    %v1015 = vadd.f32 %v995, %v1014
    %1016 = vdwg.mxu0
    %1017 = vmatpush.msra.mxu0 %v420
    %1018 = vmatpush.msra.mxu0 %v419
    %1019 = vmatpush.msra.mxu0 %v418
    %1020 = vmatpush.msra.mxu0 %v417
    %1021 = vmatpush.msra.mxu0 %v416
    %1022 = vmatpush.msra.mxu0 %v415
    %1023 = vmatpush.msra.mxu0 %v414
    %1024 = vmatpush.msra.mxu0 %v413
    %1025 = vmatpush.msra.mxu0 %v412
    %1026 = vmatpush.msra.mxu0 %v411
    %1027 = vmatpush.msra.mxu0 %v410
    %1028 = vmatpush.msra.mxu0 %v409
    %1029 = vmatpush.msra.mxu0 %v408
    %1030 = vmatpush.msra.mxu0 %v407
    %1031 = vmatpush.msra.mxu0 %v406
    %1032 = vmatpush.msra.mxu0 %v405
    %1033 = vmatmul.f32.gmra.mxu0 %v104
    %v1034 = vpop.f32.mrf.mxu0
    %v1035 = vadd.f32 %v1015, %v1034
    %1036 = vdwg.mxu0
    %1037 = vmatpush.msra.mxu0 %v436
    %1038 = vmatpush.msra.mxu0 %v435
    %1039 = vmatpush.msra.mxu0 %v434
    %1040 = vmatpush.msra.mxu0 %v433
    %1041 = vmatpush.msra.mxu0 %v432
    %1042 = vmatpush.msra.mxu0 %v431
    %1043 = vmatpush.msra.mxu0 %v430
    %1044 = vmatpush.msra.mxu0 %v429
    %1045 = vmatpush.msra.mxu0 %v428
    %1046 = vmatpush.msra.mxu0 %v427
    %1047 = vmatpush.msra.mxu0 %v426
    %1048 = vmatpush.msra.mxu0 %v425
    %1049 = vmatpush.msra.mxu0 %v424
    %1050 = vmatpush.msra.mxu0 %v423
    %1051 = vmatpush.msra.mxu0 %v422
    %1052 = vmatpush.msra.mxu0 %v421
    %1053 = vmatmul.f32.gmra.mxu0 %v110
    %v1054 = vpop.f32.mrf.mxu0
    %v1055 = vadd.f32 %v1035, %v1054
    %1056 = vdwg.mxu0
    %1057 = vmatpush.msra.mxu0 %v452
    %1058 = vmatpush.msra.mxu0 %v451
    %1059 = vmatpush.msra.mxu0 %v450
    %1060 = vmatpush.msra.mxu0 %v449
    %1061 = vmatpush.msra.mxu0 %v448
    %1062 = vmatpush.msra.mxu0 %v447
    %1063 = vmatpush.msra.mxu0 %v446
    %1064 = vmatpush.msra.mxu0 %v445
    %1065 = vmatpush.msra.mxu0 %v444
    %1066 = vmatpush.msra.mxu0 %v443
    %1067 = vmatpush.msra.mxu0 %v442
    %1068 = vmatpush.msra.mxu0 %v441
    %1069 = vmatpush.msra.mxu0 %v440
    %1070 = vmatpush.msra.mxu0 %v439
    %1071 = vmatpush.msra.mxu0 %v438
    %1072 = vmatpush.msra.mxu0 %v437
    %1073 = vmatmul.f32.gmra.mxu0 %v116
    %v1074 = vpop.f32.mrf.mxu0
    %v1075 = vadd.f32 %v1055, %v1074
    %1076 = vdwg.mxu0
    %1077 = vmatpush.msra.mxu0 %v468
    %1078 = vmatpush.msra.mxu0 %v467
    %1079 = vmatpush.msra.mxu0 %v466
    %1080 = vmatpush.msra.mxu0 %v465
    %1081 = vmatpush.msra.mxu0 %v464
    %1082 = vmatpush.msra.mxu0 %v463
    %1083 = vmatpush.msra.mxu0 %v462
    %1084 = vmatpush.msra.mxu0 %v461
    %1085 = vmatpush.msra.mxu0 %v460
    %1086 = vmatpush.msra.mxu0 %v459
    %1087 = vmatpush.msra.mxu0 %v458
    %1088 = vmatpush.msra.mxu0 %v457
    %1089 = vmatpush.msra.mxu0 %v456
    %1090 = vmatpush.msra.mxu0 %v455
    %1091 = vmatpush.msra.mxu0 %v454
    %1092 = vmatpush.msra.mxu0 %v453
    %1093 = vmatmul.f32.gmra.mxu0 %v122
    %v1094 = vpop.f32.mrf.mxu0
    %v1095 = vadd.f32 %v1075, %v1094
    %1096 = vdwg.mxu0
    %1097 = vmatpush.msra.mxu0 %v484
    %1098 = vmatpush.msra.mxu0 %v483
    %1099 = vmatpush.msra.mxu0 %v482
    %1100 = vmatpush.msra.mxu0 %v481
    %1101 = vmatpush.msra.mxu0 %v480
    %1102 = vmatpush.msra.mxu0 %v479
    %1103 = vmatpush.msra.mxu0 %v478
    %1104 = vmatpush.msra.mxu0 %v477
    %1105 = vmatpush.msra.mxu0 %v476
    %1106 = vmatpush.msra.mxu0 %v475
    %1107 = vmatpush.msra.mxu0 %v474
    %1108 = vmatpush.msra.mxu0 %v473
    %1109 = vmatpush.msra.mxu0 %v472
    %1110 = vmatpush.msra.mxu0 %v471
    %1111 = vmatpush.msra.mxu0 %v470
    %1112 = vmatpush.msra.mxu0 %v469
    %1113 = vmatmul.f32.gmra.mxu0 %v128
    %v1114 = vpop.f32.mrf.mxu0
    %v1115 = vadd.f32 %v1095, %v1114
    %1116 = vdwg.mxu0
    %1117 = vmatpush.msra.mxu0 %v500
    %1118 = vmatpush.msra.mxu0 %v499
    %1119 = vmatpush.msra.mxu0 %v498
    %1120 = vmatpush.msra.mxu0 %v497
    %1121 = vmatpush.msra.mxu0 %v496
    %1122 = vmatpush.msra.mxu0 %v495
    %1123 = vmatpush.msra.mxu0 %v494
    %1124 = vmatpush.msra.mxu0 %v493
    %1125 = vmatpush.msra.mxu0 %v492
    %1126 = vmatpush.msra.mxu0 %v491
    %1127 = vmatpush.msra.mxu0 %v490
    %1128 = vmatpush.msra.mxu0 %v489
    %1129 = vmatpush.msra.mxu0 %v488
    %1130 = vmatpush.msra.mxu0 %v487
    %1131 = vmatpush.msra.mxu0 %v486
    %1132 = vmatpush.msra.mxu0 %v485
    %1133 = vmatmul.f32.gmra.mxu0 %v134
    %v1134 = vpop.f32.mrf.mxu0
    %v1135 = vadd.f32 %v1115, %v1134
    %1136 = vdwg.mxu0
    %1137 = vmatpush.msra.mxu0 %v516
    %1138 = vmatpush.msra.mxu0 %v515
    %1139 = vmatpush.msra.mxu0 %v514
    %1140 = vmatpush.msra.mxu0 %v513
    %1141 = vmatpush.msra.mxu0 %v512
    %1142 = vmatpush.msra.mxu0 %v511
    %1143 = vmatpush.msra.mxu0 %v510
    %1144 = vmatpush.msra.mxu0 %v509
    %1145 = vmatpush.msra.mxu0 %v508
    %1146 = vmatpush.msra.mxu0 %v507
    %1147 = vmatpush.msra.mxu0 %v506
    %1148 = vmatpush.msra.mxu0 %v505
    %1149 = vmatpush.msra.mxu0 %v504
    %1150 = vmatpush.msra.mxu0 %v503
    %1151 = vmatpush.msra.mxu0 %v502
    %1152 = vmatpush.msra.mxu0 %v501
    %1153 = vmatmul.f32.gmra.mxu0 %v140
    %v1154 = vpop.f32.mrf.mxu0
    %v1155 = vadd.f32 %v1135, %v1154
    %1156 = vdwg.mxu0
    %1157 = vmatpush.msra.mxu0 %v532
    %1158 = vmatpush.msra.mxu0 %v531
    %1159 = vmatpush.msra.mxu0 %v530
    %1160 = vmatpush.msra.mxu0 %v529
    %1161 = vmatpush.msra.mxu0 %v528
    %1162 = vmatpush.msra.mxu0 %v527
    %1163 = vmatpush.msra.mxu0 %v526
    %1164 = vmatpush.msra.mxu0 %v525
    %1165 = vmatpush.msra.mxu0 %v524
    %1166 = vmatpush.msra.mxu0 %v523
    %1167 = vmatpush.msra.mxu0 %v522
    %1168 = vmatpush.msra.mxu0 %v521
    %1169 = vmatpush.msra.mxu0 %v520
    %1170 = vmatpush.msra.mxu0 %v519
    %1171 = vmatpush.msra.mxu0 %v518
    %1172 = vmatpush.msra.mxu0 %v517
    %1173 = vmatmul.f32.gmra.mxu0 %v146
    %v1174 = vpop.f32.mrf.mxu0
    %v1175 = vadd.f32 %v1155, %v1174
    %1176 = vdwg.mxu0
    %1177 = vmatpush.msra.mxu0 %v548
    %1178 = vmatpush.msra.mxu0 %v547
    %1179 = vmatpush.msra.mxu0 %v546
    %1180 = vmatpush.msra.mxu0 %v545
    %1181 = vmatpush.msra.mxu0 %v544
    %1182 = vmatpush.msra.mxu0 %v543
    %1183 = vmatpush.msra.mxu0 %v542
    %1184 = vmatpush.msra.mxu0 %v541
    %1185 = vmatpush.msra.mxu0 %v540
    %1186 = vmatpush.msra.mxu0 %v539
    %1187 = vmatpush.msra.mxu0 %v538
    %1188 = vmatpush.msra.mxu0 %v537
    %1189 = vmatpush.msra.mxu0 %v536
    %1190 = vmatpush.msra.mxu0 %v535
    %1191 = vmatpush.msra.mxu0 %v534
    %1192 = vmatpush.msra.mxu0 %v533
    %1193 = vmatmul.f32.gmra.mxu0 %v152
    %v1194 = vpop.f32.mrf.mxu0
    %v1195 = vadd.f32 %v1175, %v1194
    %1196 = vdwg.mxu0
    %1197 = vmatpush.msra.mxu0 %v564
    %1198 = vmatpush.msra.mxu0 %v563
    %1199 = vmatpush.msra.mxu0 %v562
    %1200 = vmatpush.msra.mxu0 %v561
    %1201 = vmatpush.msra.mxu0 %v560
    %1202 = vmatpush.msra.mxu0 %v559
    %1203 = vmatpush.msra.mxu0 %v558
    %1204 = vmatpush.msra.mxu0 %v557
    %1205 = vmatpush.msra.mxu0 %v556
    %1206 = vmatpush.msra.mxu0 %v555
    %1207 = vmatpush.msra.mxu0 %v554
    %1208 = vmatpush.msra.mxu0 %v553
    %1209 = vmatpush.msra.mxu0 %v552
    %1210 = vmatpush.msra.mxu0 %v551
    %1211 = vmatpush.msra.mxu0 %v550
    %1212 = vmatpush.msra.mxu0 %v549
    %1213 = vmatmul.f32.gmra.mxu0 %v158
    %v1214 = vpop.f32.mrf.mxu0
    %v1215 = vadd.f32 %v1195, %v1214
    %1216 = vdwg.mxu0
    %1217 = vmatpush.msra.mxu0 %v580
    %1218 = vmatpush.msra.mxu0 %v579
    %1219 = vmatpush.msra.mxu0 %v578
    %1220 = vmatpush.msra.mxu0 %v577
    %1221 = vmatpush.msra.mxu0 %v576
    %1222 = vmatpush.msra.mxu0 %v575
    %1223 = vmatpush.msra.mxu0 %v574
    %1224 = vmatpush.msra.mxu0 %v573
    %1225 = vmatpush.msra.mxu0 %v572
    %1226 = vmatpush.msra.mxu0 %v571
    %1227 = vmatpush.msra.mxu0 %v570
    %1228 = vmatpush.msra.mxu0 %v569
    %1229 = vmatpush.msra.mxu0 %v568
    %1230 = vmatpush.msra.mxu0 %v567
    %1231 = vmatpush.msra.mxu0 %v566
    %1232 = vmatpush.msra.mxu0 %v565
    %1233 = vmatmul.f32.gmra.mxu0 %v164
    %v1234 = vpop.f32.mrf.mxu0
    %v1235 = vadd.f32 %v1215, %v1234
    %1236 = vdwg.mxu0
    %1237 = vmatpush.msra.mxu0 %v596
    %1238 = vmatpush.msra.mxu0 %v595
    %1239 = vmatpush.msra.mxu0 %v594
    %1240 = vmatpush.msra.mxu0 %v593
    %1241 = vmatpush.msra.mxu0 %v592
    %1242 = vmatpush.msra.mxu0 %v591
    %1243 = vmatpush.msra.mxu0 %v590
    %1244 = vmatpush.msra.mxu0 %v589
    %1245 = vmatpush.msra.mxu0 %v588
    %1246 = vmatpush.msra.mxu0 %v587
    %1247 = vmatpush.msra.mxu0 %v586
    %1248 = vmatpush.msra.mxu0 %v585
    %1249 = vmatpush.msra.mxu0 %v584
    %1250 = vmatpush.msra.mxu0 %v583
    %1251 = vmatpush.msra.mxu0 %v582
    %1252 = vmatpush.msra.mxu0 %v581
    %1253 = vmatmul.f32.gmra.mxu0 %v170
    %v1254 = vpop.f32.mrf.mxu0
    %v1255 = vadd.f32 %v1235, %v1254
    %1256 = vdwg.mxu0
    %1257 = vmatpush.msra.mxu0 %v612
    %1258 = vmatpush.msra.mxu0 %v611
    %1259 = vmatpush.msra.mxu0 %v610
    %1260 = vmatpush.msra.mxu0 %v609
    %1261 = vmatpush.msra.mxu0 %v608
    %1262 = vmatpush.msra.mxu0 %v607
    %1263 = vmatpush.msra.mxu0 %v606
    %1264 = vmatpush.msra.mxu0 %v605
    %1265 = vmatpush.msra.mxu0 %v604
    %1266 = vmatpush.msra.mxu0 %v603
    %1267 = vmatpush.msra.mxu0 %v602
    %1268 = vmatpush.msra.mxu0 %v601
    %1269 = vmatpush.msra.mxu0 %v600
    %1270 = vmatpush.msra.mxu0 %v599
    %1271 = vmatpush.msra.mxu0 %v598
    %1272 = vmatpush.msra.mxu0 %v597
    %1273 = vmatmul.f32.gmra.mxu0 %v176
    %v1274 = vpop.f32.mrf.mxu0
    %v1275 = vadd.f32 %v1255, %v1274
    %1276 = vdwg.mxu0
    %1277 = vmatpush.msra.mxu0 %v628
    %1278 = vmatpush.msra.mxu0 %v627
    %1279 = vmatpush.msra.mxu0 %v626
    %1280 = vmatpush.msra.mxu0 %v625
    %1281 = vmatpush.msra.mxu0 %v624
    %1282 = vmatpush.msra.mxu0 %v623
    %1283 = vmatpush.msra.mxu0 %v622
    %1284 = vmatpush.msra.mxu0 %v621
    %1285 = vmatpush.msra.mxu0 %v620
    %1286 = vmatpush.msra.mxu0 %v619
    %1287 = vmatpush.msra.mxu0 %v618
    %1288 = vmatpush.msra.mxu0 %v617
    %1289 = vmatpush.msra.mxu0 %v616
    %1290 = vmatpush.msra.mxu0 %v615
    %1291 = vmatpush.msra.mxu0 %v614
    %1292 = vmatpush.msra.mxu0 %v613
    %1293 = vmatmul.f32.gmra.mxu0 %v182
    %v1294 = vpop.f32.mrf.mxu0
    %v1295 = vadd.f32 %v1275, %v1294
    %1296 = vdwg.mxu0
    %1297 = vmatpush.msra.mxu0 %v644
    %1298 = vmatpush.msra.mxu0 %v643
    %1299 = vmatpush.msra.mxu0 %v642
    %1300 = vmatpush.msra.mxu0 %v641
    %1301 = vmatpush.msra.mxu0 %v640
    %1302 = vmatpush.msra.mxu0 %v639
    %1303 = vmatpush.msra.mxu0 %v638
    %1304 = vmatpush.msra.mxu0 %v637
    %1305 = vmatpush.msra.mxu0 %v636
    %1306 = vmatpush.msra.mxu0 %v635
    %1307 = vmatpush.msra.mxu0 %v634
    %1308 = vmatpush.msra.mxu0 %v633
    %1309 = vmatpush.msra.mxu0 %v632
    %1310 = vmatpush.msra.mxu0 %v631
    %1311 = vmatpush.msra.mxu0 %v630
    %1312 = vmatpush.msra.mxu0 %v629
    %1313 = vmatmul.f32.gmra.mxu0 %v188
    %v1314 = vpop.f32.mrf.mxu0
    %v1315 = vadd.f32 %v1295, %v1314
    %1316 = vdwg.mxu0
    %1317 = vmatpush.msra.mxu0 %v660
    %1318 = vmatpush.msra.mxu0 %v659
    %1319 = vmatpush.msra.mxu0 %v658
    %1320 = vmatpush.msra.mxu0 %v657
    %1321 = vmatpush.msra.mxu0 %v656
    %1322 = vmatpush.msra.mxu0 %v655
    %1323 = vmatpush.msra.mxu0 %v654
    %1324 = vmatpush.msra.mxu0 %v653
    %1325 = vmatpush.msra.mxu0 %v652
    %1326 = vmatpush.msra.mxu0 %v651
    %1327 = vmatpush.msra.mxu0 %v650
    %1328 = vmatpush.msra.mxu0 %v649
    %1329 = vmatpush.msra.mxu0 %v648
    %1330 = vmatpush.msra.mxu0 %v647
    %1331 = vmatpush.msra.mxu0 %v646
    %1332 = vmatpush.msra.mxu0 %v645
    %1333 = vmatmul.f32.gmra.mxu0 %v194
    %v1334 = vpop.f32.mrf.mxu0
    %v1335 = vadd.f32 %v1315, %v1334
    %1336 = vdwg.mxu0
    %1337 = vmatpush.msra.mxu0 %v676
    %1338 = vmatpush.msra.mxu0 %v675
    %1339 = vmatpush.msra.mxu0 %v674
    %1340 = vmatpush.msra.mxu0 %v673
    %1341 = vmatpush.msra.mxu0 %v672
    %1342 = vmatpush.msra.mxu0 %v671
    %1343 = vmatpush.msra.mxu0 %v670
    %1344 = vmatpush.msra.mxu0 %v669
    %1345 = vmatpush.msra.mxu0 %v668
    %1346 = vmatpush.msra.mxu0 %v667
    %1347 = vmatpush.msra.mxu0 %v666
    %1348 = vmatpush.msra.mxu0 %v665
    %1349 = vmatpush.msra.mxu0 %v664
    %1350 = vmatpush.msra.mxu0 %v663
    %1351 = vmatpush.msra.mxu0 %v662
    %1352 = vmatpush.msra.mxu0 %v661
    %1353 = vmatmul.f32.gmra.mxu0 %v200
    %v1354 = vpop.f32.mrf.mxu0
    %v1355 = vadd.f32 %v1335, %v1354
    %1356 = vdwg.mxu0
    %1357 = vmatpush.msra.mxu0 %v692
    %1358 = vmatpush.msra.mxu0 %v691
    %1359 = vmatpush.msra.mxu0 %v690
    %1360 = vmatpush.msra.mxu0 %v689
    %1361 = vmatpush.msra.mxu0 %v688
    %1362 = vmatpush.msra.mxu0 %v687
    %1363 = vmatpush.msra.mxu0 %v686
    %1364 = vmatpush.msra.mxu0 %v685
    %1365 = vmatpush.msra.mxu0 %v684
    %1366 = vmatpush.msra.mxu0 %v683
    %1367 = vmatpush.msra.mxu0 %v682
    %1368 = vmatpush.msra.mxu0 %v681
    %1369 = vmatpush.msra.mxu0 %v680
    %1370 = vmatpush.msra.mxu0 %v679
    %1371 = vmatpush.msra.mxu0 %v678
    %1372 = vmatpush.msra.mxu0 %v677
    %1373 = vmatmul.f32.gmra.mxu0 %v206
    %v1374 = vpop.f32.mrf.mxu0
    %v1375 = vadd.f32 %v1355, %v1374
    %1376 = vdwg.mxu0
    %1377 = vmatpush.msra.mxu0 %v708
    %1378 = vmatpush.msra.mxu0 %v707
    %1379 = vmatpush.msra.mxu0 %v706
    %1380 = vmatpush.msra.mxu0 %v705
    %1381 = vmatpush.msra.mxu0 %v704
    %1382 = vmatpush.msra.mxu0 %v703
    %1383 = vmatpush.msra.mxu0 %v702
    %1384 = vmatpush.msra.mxu0 %v701
    %1385 = vmatpush.msra.mxu0 %v700
    %1386 = vmatpush.msra.mxu0 %v699
    %1387 = vmatpush.msra.mxu0 %v698
    %1388 = vmatpush.msra.mxu0 %v697
    %1389 = vmatpush.msra.mxu0 %v696
    %1390 = vmatpush.msra.mxu0 %v695
    %1391 = vmatpush.msra.mxu0 %v694
    %1392 = vmatpush.msra.mxu0 %v693
    %1393 = vmatmul.f32.gmra.mxu0 %v212
    %v1394 = vpop.f32.mrf.mxu0
    %v1395 = vadd.f32 %v1375, %v1394
    %1396 = vdwg.mxu0
    %1397 = vmatpush.msra.mxu0 %v724
    %1398 = vmatpush.msra.mxu0 %v723
    %1399 = vmatpush.msra.mxu0 %v722
    %1400 = vmatpush.msra.mxu0 %v721
    %1401 = vmatpush.msra.mxu0 %v720
    %1402 = vmatpush.msra.mxu0 %v719
    %1403 = vmatpush.msra.mxu0 %v718
    %1404 = vmatpush.msra.mxu0 %v717
    %1405 = vmatpush.msra.mxu0 %v716
    %1406 = vmatpush.msra.mxu0 %v715
    %1407 = vmatpush.msra.mxu0 %v714
    %1408 = vmatpush.msra.mxu0 %v713
    %1409 = vmatpush.msra.mxu0 %v712
    %1410 = vmatpush.msra.mxu0 %v711
    %1411 = vmatpush.msra.mxu0 %v710
    %1412 = vmatpush.msra.mxu0 %v709
    %1413 = vmatmul.f32.gmra.mxu0 %v218
    %v1414 = vpop.f32.mrf.mxu0
    %v1415 = vadd.f32 %v1395, %v1414
    %1416 = vdwg.mxu0
    %1417 = vmatpush.msra.mxu0 %v740
    %1418 = vmatpush.msra.mxu0 %v739
    %1419 = vmatpush.msra.mxu0 %v738
    %1420 = vmatpush.msra.mxu0 %v737
    %1421 = vmatpush.msra.mxu0 %v736
    %1422 = vmatpush.msra.mxu0 %v735
    %1423 = vmatpush.msra.mxu0 %v734
    %1424 = vmatpush.msra.mxu0 %v733
    %1425 = vmatpush.msra.mxu0 %v732
    %1426 = vmatpush.msra.mxu0 %v731
    %1427 = vmatpush.msra.mxu0 %v730
    %1428 = vmatpush.msra.mxu0 %v729
    %1429 = vmatpush.msra.mxu0 %v728
    %1430 = vmatpush.msra.mxu0 %v727
    %1431 = vmatpush.msra.mxu0 %v726
    %1432 = vmatpush.msra.mxu0 %v725
    %1433 = vmatmul.f32.gmra.mxu0 %v224
    %v1434 = vpop.f32.mrf.mxu0
    %v1435 = vadd.f32 %v1415, %v1434
    %1436 = vdwg.mxu0
    %1437 = vmatpush.msra.mxu0 %v756
    %1438 = vmatpush.msra.mxu0 %v755
    %1439 = vmatpush.msra.mxu0 %v754
    %1440 = vmatpush.msra.mxu0 %v753
    %1441 = vmatpush.msra.mxu0 %v752
    %1442 = vmatpush.msra.mxu0 %v751
    %1443 = vmatpush.msra.mxu0 %v750
    %1444 = vmatpush.msra.mxu0 %v749
    %1445 = vmatpush.msra.mxu0 %v748
    %1446 = vmatpush.msra.mxu0 %v747
    %1447 = vmatpush.msra.mxu0 %v746
    %1448 = vmatpush.msra.mxu0 %v745
    %1449 = vmatpush.msra.mxu0 %v744
    %1450 = vmatpush.msra.mxu0 %v743
    %1451 = vmatpush.msra.mxu0 %v742
    %1452 = vmatpush.msra.mxu0 %v741
    %1453 = vmatmul.f32.gmra.mxu0 %v230
    %v1454 = vpop.f32.mrf.mxu0
    %v1455 = vadd.f32 %v1435, %v1454
    %1456 = vdwg.mxu0
    %1457 = vmatpush.msra.mxu0 %v772
    %1458 = vmatpush.msra.mxu0 %v771
    %1459 = vmatpush.msra.mxu0 %v770
    %1460 = vmatpush.msra.mxu0 %v769
    %1461 = vmatpush.msra.mxu0 %v768
    %1462 = vmatpush.msra.mxu0 %v767
    %1463 = vmatpush.msra.mxu0 %v766
    %1464 = vmatpush.msra.mxu0 %v765
    %1465 = vmatpush.msra.mxu0 %v764
    %1466 = vmatpush.msra.mxu0 %v763
    %1467 = vmatpush.msra.mxu0 %v762
    %1468 = vmatpush.msra.mxu0 %v761
    %1469 = vmatpush.msra.mxu0 %v760
    %1470 = vmatpush.msra.mxu0 %v759
    %1471 = vmatpush.msra.mxu0 %v758
    %1472 = vmatpush.msra.mxu0 %v757
    %1473 = vmatmul.f32.gmra.mxu0 %v236
    %v1474 = vpop.f32.mrf.mxu0
    %v1475 = vadd.f32 %v1455, %v1474
    %1476 = vdwg.mxu0
    %1477 = vmatpush.msra.mxu0 %v788
    %1478 = vmatpush.msra.mxu0 %v787
    %1479 = vmatpush.msra.mxu0 %v786
    %1480 = vmatpush.msra.mxu0 %v785
    %1481 = vmatpush.msra.mxu0 %v784
    %1482 = vmatpush.msra.mxu0 %v783
    %1483 = vmatpush.msra.mxu0 %v782
    %1484 = vmatpush.msra.mxu0 %v781
    %1485 = vmatpush.msra.mxu0 %v780
    %1486 = vmatpush.msra.mxu0 %v779
    %1487 = vmatpush.msra.mxu0 %v778
    %1488 = vmatpush.msra.mxu0 %v777
    %1489 = vmatpush.msra.mxu0 %v776
    %1490 = vmatpush.msra.mxu0 %v775
    %1491 = vmatpush.msra.mxu0 %v774
    %1492 = vmatpush.msra.mxu0 %v773
    %1493 = vmatmul.f32.gmra.mxu0 %v242
    %v1494 = vpop.f32.mrf.mxu0
    %v1495 = vadd.f32 %v1475, %v1494
    %1496 = vdwg.mxu0
    %1497 = vmatpush.msra.mxu0 %v804
    %1498 = vmatpush.msra.mxu0 %v803
    %1499 = vmatpush.msra.mxu0 %v802
    %1500 = vmatpush.msra.mxu0 %v801
    %1501 = vmatpush.msra.mxu0 %v800
    %1502 = vmatpush.msra.mxu0 %v799
    %1503 = vmatpush.msra.mxu0 %v798
    %1504 = vmatpush.msra.mxu0 %v797
    %1505 = vmatpush.msra.mxu0 %v796
    %1506 = vmatpush.msra.mxu0 %v795
    %1507 = vmatpush.msra.mxu0 %v794
    %1508 = vmatpush.msra.mxu0 %v793
    %1509 = vmatpush.msra.mxu0 %v792
    %1510 = vmatpush.msra.mxu0 %v791
    %1511 = vmatpush.msra.mxu0 %v790
    %1512 = vmatpush.msra.mxu0 %v789
    %1513 = vmatmul.f32.gmra.mxu0 %v248
    %v1514 = vpop.f32.mrf.mxu0
    %v1515 = vadd.f32 %v1495, %v1514
    %1516 = vdwg.mxu0
    %1517 = vmatpush.msra.mxu0 %v820
    %1518 = vmatpush.msra.mxu0 %v819
    %1519 = vmatpush.msra.mxu0 %v818
    %1520 = vmatpush.msra.mxu0 %v817
    %1521 = vmatpush.msra.mxu0 %v816
    %1522 = vmatpush.msra.mxu0 %v815
    %1523 = vmatpush.msra.mxu0 %v814
    %1524 = vmatpush.msra.mxu0 %v813
    %1525 = vmatpush.msra.mxu0 %v812
    %1526 = vmatpush.msra.mxu0 %v811
    %1527 = vmatpush.msra.mxu0 %v810
    %1528 = vmatpush.msra.mxu0 %v809
    %1529 = vmatpush.msra.mxu0 %v808
    %1530 = vmatpush.msra.mxu0 %v807
    %1531 = vmatpush.msra.mxu0 %v806
    %1532 = vmatpush.msra.mxu0 %v805
    %1533 = vmatmul.f32.gmra.mxu0 %v254
    %v1534 = vpop.f32.mrf.mxu0
    %v1535 = vadd.f32 %v1515, %v1534
    %1536 = vdwg.mxu0
    %1537 = vmatpush.msra.mxu0 %v836
    %1538 = vmatpush.msra.mxu0 %v835
    %1539 = vmatpush.msra.mxu0 %v834
    %1540 = vmatpush.msra.mxu0 %v833
    %1541 = vmatpush.msra.mxu0 %v832
    %1542 = vmatpush.msra.mxu0 %v831
    %1543 = vmatpush.msra.mxu0 %v830
    %1544 = vmatpush.msra.mxu0 %v829
    %1545 = vmatpush.msra.mxu0 %v828
    %1546 = vmatpush.msra.mxu0 %v827
    %1547 = vmatpush.msra.mxu0 %v826
    %1548 = vmatpush.msra.mxu0 %v825
    %1549 = vmatpush.msra.mxu0 %v824
    %1550 = vmatpush.msra.mxu0 %v823
    %1551 = vmatpush.msra.mxu0 %v822
    %1552 = vmatpush.msra.mxu0 %v821
    %1553 = vmatmul.f32.gmra.mxu0 %v260
    %v1554 = vpop.f32.mrf.mxu0
    %v1555 = vadd.f32 %v1535, %v1554
    %1556 = vdwg.mxu0
    %1557 = vst [vmem:[#allocation7] sm:$0xff] %v1555
    // Predicated region
    $region18: #{tpu_custom_call.1} parent=1 // pred_check
      _
    $region19: #{tpu_custom_call.1} parent=1 // pred_check_branch
      %1559 = sbr.rel (0) target = $region21
    $region20: #{tpu_custom_call.1} parent=1 // pred_region
      %1561 = vsyncadd [#allocation4], 0
      %s1563 = sshll.u32 [#allocation7], 4
      %s1564 = int_to_ptr.vmem [resolvable:$true] %s1563
      %s1565 = sshll.u32 %s2, 4
      %s1566 = int_to_ptr.hbm [resolvable:$true] %s1565
      %1568 = dma.vmem_to_hbm [thread:$0]  %s1564, 128, %s1566, [#allocation4]
    $region21: #{tpu_custom_call.1} parent=1 // pred_fallthru
      _
    // Predicated region
    $region22: #{tpu_custom_call.1} parent=1 // pred_check
      _
    $region23: #{tpu_custom_call.1} parent=1 // pred_check_branch
      %1570 = sbr.rel (0) target = $region25
    $region24: #{tpu_custom_call.1} parent=1 // pred_region
      %1572 = dma.done [#allocation4], 128
    $region25: #{tpu_custom_call.1} parent=1 // pred_fallthru
      _
    %1573 = vsyncpa [#allocation3], 1
    %1574 = vsyncpa [#allocation6], 1
    %1575 = vsyncpa [#allocation4], 1

</llo_original>
